<compile_context>
chip_gen: v7x
topology: tpu7x:2x2x1
jax: 0.10.0
libtpu: 0.0.40
codegen_flags: <defaults>
</compile_context>

<pallas_src>
import jax
import jax.numpy as jnp
from jax.experimental import pallas as pl
from jax.experimental.pallas import tpu as pltpu


# ----------------------------------------------------------------------------
# Config (consistent with the PyTorch module's __init__)
# ----------------------------------------------------------------------------
class Config:
    voc_size = 32
    embed_size = 16
    hidden_size = 32
    num_layers = 1
    dropout = 0.0
    max_len = 8
    num_classes = 4
    batch_size = 2


HP = 64  # padded per-direction hidden width -> one gate block = 128 lanes


# ----------------------------------------------------------------------------
# Fused Pallas kernel
# ----------------------------------------------------------------------------
def _textrcnn_kernel(seq_ref,    # VMEM (T*B, 1) int32, time-major rows
                     emb_ref,    # VMEM (V, E)      bf16
                     wih_ref,    # VMEM (E, 8Hp)    bf16, cols [i_f i_b f_f f_b g_f g_b o_f o_b]
                     whh_ref,    # VMEM (2Hp, 8Hp)  bf16, block-diag, rows [h_f | h_b]
                     b_ref,      # VMEM (1, 8Hp)    f32 (b_ih + b_hh)
                     fcwh_ref,   # VMEM (2Hp, C)    bf16, rows [fwd Hp | bwd Hp]
                     fcwe_ref,   # VMEM (E, C)      bf16
                     fcb_ref,    # VMEM (1, C)      f32
                     out_ref):   # VMEM (B, C)      f32
    V, E = emb_ref.shape
    Hp = whh_ref.shape[0] // 2
    G = 2 * Hp                      # one gate block [fwd Hp | bwd Hp] = 128 lanes
    B, C = out_ref.shape
    TB = seq_ref.shape[0]
    T = TB // B

    # ---- one-hot MXU embedding gather (no scalar loop, no VMEM scratch) ----
    ids = seq_ref[...]                                            # (T*B, 1)
    iota_v = jax.lax.broadcasted_iota(jnp.int32, (TB, V), 1)
    one_hot = (iota_v == ids).astype(jnp.float32)                 # (T*B, V)
    # row t*B + b holds the embedding of token (b, t)
    x = jnp.dot(one_hot.astype(jnp.bfloat16), emb_ref[...],
                preferred_element_type=jnp.float32)               # (T*B, E) f32

    # ---- relu + max-pool over time of the embedding (running max from 0) ---
    pooled_e = jnp.zeros((B, E), jnp.float32)
    for t in range(T):
        pooled_e = jnp.maximum(pooled_e, x[t * B:(t + 1) * B, :])

    # ---- hoisted input-to-hidden matmul for BOTH directions ----------------
    gates_in = jnp.dot(x.astype(jnp.bfloat16), wih_ref[...],
                       preferred_element_type=jnp.float32) + b_ref[...]  # (T*B, 8Hp)

    # ---- per-step direction select, hoisted off the recurrence crit path ---
    lane = jax.lax.broadcasted_iota(jnp.int32, (B, 4 * G), 1)
    fwd_mask = (lane % G) < Hp                      # first Hp lanes of each gate = fwd
    gin_step = []
    for s in range(T):
        gf = gates_in[s * B:(s + 1) * B, :]             # fwd consumes time s
        gb = gates_in[(T - 1 - s) * B:(T - s) * B, :]   # bwd consumes time T-1-s
        gin_step.append(jnp.where(fwd_mask, gf, gb))

    # ---- fused fwd+bwd recurrence, statically unrolled, vreg-aligned gates -
    h = jnp.zeros((B, G), jnp.float32)              # [h_fwd | h_bwd]
    c = jnp.zeros((B, G), jnp.float32)
    pooled_h = jnp.zeros((B, G), jnp.float32)       # running relu-max of hidden
    whh = whh_ref[...]
    for s in range(T):
        rec = jnp.dot(h.astype(jnp.bfloat16), whh,
                      preferred_element_type=jnp.float32)          # (B, 4G)
        gates = rec + gin_step[s]
        i_g = jax.nn.sigmoid(gates[:, 0 * G:1 * G])
        f_g = jax.nn.sigmoid(gates[:, 1 * G:2 * G])
        g_g = jnp.tanh(gates[:, 2 * G:3 * G])
        o_g = jax.nn.sigmoid(gates[:, 3 * G:4 * G])
        c = f_g * c + i_g * g_g
        h = o_g * jnp.tanh(c)
        pooled_h = jnp.maximum(pooled_h, h)         # relu-max pooling over time

    # ---- fc (split column blocks: no (2H+E) concat) + softmax --------------
    logits = (jnp.dot(pooled_h.astype(jnp.bfloat16), fcwh_ref[...],
                      preferred_element_type=jnp.float32)
              + jnp.dot(pooled_e.astype(jnp.bfloat16), fcwe_ref[...],
                        preferred_element_type=jnp.float32)
              + fcb_ref[...])                                      # (B, C)
    m = jnp.max(logits, axis=1, keepdims=True)
    e = jnp.exp(logits - m)
    denom = jnp.sum(e, axis=1, keepdims=True)
    out_ref[...] = e * pl.reciprocal(denom, approx=True)           # softmax(dim=1)


# ----------------------------------------------------------------------------
# pallas_call wrapper
# ----------------------------------------------------------------------------
def _full_spec(shape):
    nd = len(shape)
    return pl.BlockSpec(shape, lambda i, _nd=nd: (0,) * _nd)


def text_rcnn_pallas(seq_col, params, *, B):
    C = params["fc_b"].shape[1]
    args = (seq_col, params["embedding"], params["wih"], params["whh"],
            params["b"], params["fc_wh"], params["fc_we"], params["fc_b"])
    return pl.pallas_call(
        _textrcnn_kernel,
        grid=(1,),
        in_specs=[_full_spec(a.shape) for a in args],
        out_specs=_full_spec((B, C)),
        out_shape=jax.ShapeDtypeStruct((B, C), jnp.float32),
        compiler_params=pltpu.CompilerParams(
            dimension_semantics=("arbitrary",)),
    )(*args)


# ----------------------------------------------------------------------------
# Parameter initialization (PyTorch-like init, then fused/padded kernel layout)
# ----------------------------------------------------------------------------
def init_params(cfg, key):
    V, E, H, C = cfg.voc_size, cfg.embed_size, cfg.hidden_size, cfg.num_classes
    Hp = HP
    assert cfg.num_layers == 1     # TODO(synk): >1 BiLSTM layers / dropout unsupported
    assert H <= Hp
    keys = iter(jax.random.split(key, 12))

    # nn.Embedding: N(0, 1) init, padding_idx (= voc_size - 1) row zeroed.
    emb = jax.random.normal(next(keys), (V, E), jnp.float32)
    emb = emb.at[V - 1].set(0.0)

    def uni(k, shape, bound):
        return jax.random.uniform(k, shape, jnp.float32, -bound, bound)

    bound = 1.0 / float(H) ** 0.5

    def lstm_dir():
        w_ih = uni(next(keys), (4 * H, E), bound)     # PyTorch gate order i,f,g,o
        w_hh = uni(next(keys), (4 * H, H), bound)
        b_ih = uni(next(keys), (4 * H,), bound)
        b_hh = uni(next(keys), (4 * H,), bound)
        return w_ih.T, w_hh.T, b_ih + b_hh            # (E,4H), (H,4H), (4H,)

    wih_f, whh_f, b_f = lstm_dir()                    # forward direction
    wih_b, whh_b, b_b = lstm_dir()                    # backward direction

    # Gate block k owns columns [2k*Hp, 2(k+1)*Hp); first Hp lanes fwd, next Hp bwd.
    wih_cat = jnp.zeros((E, 8 * Hp), jnp.float32)
    whh_cat = jnp.zeros((2 * Hp, 8 * Hp), jnp.float32)
    b_cat = jnp.zeros((1, 8 * Hp), jnp.float32)
    for k in range(4):
        cf = 2 * k * Hp               # fwd half of gate k
        cb = cf + Hp                  # bwd half of gate k
        wih_cat = wih_cat.at[:, cf:cf + H].set(wih_f[:, k * H:(k + 1) * H])
        wih_cat = wih_cat.at[:, cb:cb + H].set(wih_b[:, k * H:(k + 1) * H])
        whh_cat = whh_cat.at[0:H, cf:cf + H].set(whh_f[:, k * H:(k + 1) * H])
        whh_cat = whh_cat.at[Hp:Hp + H, cb:cb + H].set(whh_b[:, k * H:(k + 1) * H])
        b_cat = b_cat.at[0, cf:cf + H].set(b_f[k * H:(k + 1) * H])
        b_cat = b_cat.at[0, cb:cb + H].set(b_b[k * H:(k + 1) * H])

    # nn.Linear over concat([lstm_out, embedded]) -> rows [fwd H | bwd H | emb E]
    fc_in = 2 * H + E
    fc_bound = 1.0 / float(fc_in) ** 0.5
    fc_w = uni(next(keys), (C, fc_in), fc_bound)
    fc_b = uni(next(keys), (C,), fc_bound)
    fc_w_t = fc_w.T                                   # (2H+E, C)
    fc_wh = jnp.zeros((2 * Hp, C), jnp.float32)
    fc_wh = fc_wh.at[0:H, :].set(fc_w_t[0:H, :])
    fc_wh = fc_wh.at[Hp:Hp + H, :].set(fc_w_t[H:2 * H, :])
    fc_we = fc_w_t[2 * H:, :]                         # (E, C)

    bf16 = jnp.bfloat16
    return {
        "embedding": emb.astype(bf16),
        "wih": wih_cat.astype(bf16),
        "whh": whh_cat.astype(bf16),
        "b": b_cat,                                   # f32 (added after f32-accum matmul)
        "fc_wh": fc_wh.astype(bf16),
        "fc_we": fc_we.astype(bf16),
        "fc_b": fc_b.reshape(1, C),                   # f32
    }


# ----------------------------------------------------------------------------
# Forward pass (mirrors TextRCNN.forward) — a single fused pallas_call
# ----------------------------------------------------------------------------
@jax.jit
def text_rcnn_forward(input_seq, params):
    B, T = input_seq.shape
    # time-major flat tokens: row t*B + b holds input_seq[b, t].
    # NOTE: out-of-range token ids produce an all-zero one-hot row (zero
    # embedding) instead of nn.Embedding's runtime error.
    seq_col = input_seq.T.reshape(T * B, 1).astype(jnp.int32)
    return text_rcnn_pallas(seq_col, params, B=B)


# ----------------------------------------------------------------------------
# Main
# ----------------------------------------------------------------------------
if __name__ == "__main__":
    cfg = Config()
    key = jax.random.PRNGKey(0)
    pkey, dkey = jax.random.split(key)

    params = init_params(cfg, pkey)

    # input_seq: LongTensor [batch_size, max_len]
    input_seq = jax.random.randint(
        dkey, (cfg.batch_size, cfg.max_len), 0, cfg.voc_size, dtype=jnp.int32)

    probs = text_rcnn_forward(input_seq, params)
    probs = jax.block_until_ready(probs)

    assert probs.shape == (cfg.batch_size, cfg.num_classes)
    assert bool(jnp.all(jnp.isfinite(probs)))
    # softmax rows sum to ~1 (approx EUP reciprocal -> loose tolerance)
    assert bool(jnp.allclose(jnp.sum(probs, axis=1), 1.0, atol=1e-2))

    print("KERNEL_OK")
</pallas_src>

<mosaic_0001>
module attributes {stable_mosaic.version = 11 : i64} {
  func.func @_textrcnn_kernel(%arg0: i32, %arg1: memref<16x1xi32, #tpu.memory_space<vmem>>, %arg2: memref<32x16xbf16, #tpu.memory_space<vmem>>, %arg3: memref<16x512xbf16, #tpu.memory_space<vmem>>, %arg4: memref<128x512xbf16, #tpu.memory_space<vmem>>, %arg5: memref<1x512xf32, #tpu.memory_space<vmem>>, %arg6: memref<128x4xbf16, #tpu.memory_space<vmem>>, %arg7: memref<16x4xbf16, #tpu.memory_space<vmem>>, %arg8: memref<1x4xf32, #tpu.memory_space<vmem>>, %arg9: memref<2x4xf32, #tpu.memory_space<vmem>>) attributes {dimension_semantics = [#tpu.dimension_semantics<arbitrary>], iteration_bounds = array<i64: 1>, scalar_prefetch = 0 : i64, scratch_operands = 0 : i64, tpu.core_type = #tpu.core_type<tc>, window_params = [{pipeline_mode = #tpu.pipeline_mode<synchronous>, transform_indices = @transform_0, window_bounds = array<i64: 16, 1>}, {pipeline_mode = #tpu.pipeline_mode<synchronous>, transform_indices = @transform_1, window_bounds = array<i64: 32, 16>}, {pipeline_mode = #tpu.pipeline_mode<synchronous>, transform_indices = @transform_2, window_bounds = array<i64: 16, 512>}, {pipeline_mode = #tpu.pipeline_mode<synchronous>, transform_indices = @transform_3, window_bounds = array<i64: 128, 512>}, {pipeline_mode = #tpu.pipeline_mode<synchronous>, transform_indices = @transform_4, window_bounds = array<i64: 1, 512>}, {pipeline_mode = #tpu.pipeline_mode<synchronous>, transform_indices = @transform_5, window_bounds = array<i64: 128, 4>}, {pipeline_mode = #tpu.pipeline_mode<synchronous>, transform_indices = @transform_6, window_bounds = array<i64: 16, 4>}, {pipeline_mode = #tpu.pipeline_mode<synchronous>, transform_indices = @transform_7, window_bounds = array<i64: 1, 4>}, {pipeline_mode = #tpu.pipeline_mode<synchronous>, transform_indices = @transform_8, window_bounds = array<i64: 2, 4>}]} {
    %c0 = arith.constant 0 : index
    %c0_0 = arith.constant 0 : index
    %0 = vector.load %arg1[%c0, %c0_0] : memref<16x1xi32, #tpu.memory_space<vmem>>, vector<16x1xi32>
    %1 = tpu.iota {dimensions = array<i32: 1>} : vector<16x32xi32>
    %2 = vector.broadcast %0 : vector<16x1xi32> to vector<16x32xi32>
    %3 = arith.cmpi eq, %1, %2 : vector<16x32xi32>
    %4 = arith.extui %3 : vector<16x32xi1> to vector<16x32xi32>
    %5 = arith.sitofp %4 : vector<16x32xi32> to vector<16x32xf32>
    %6 = arith.truncf %5 : vector<16x32xf32> to vector<16x32xbf16>
    %c0_1 = arith.constant 0 : index
    %c0_2 = arith.constant 0 : index
    %7 = vector.load %arg2[%c0_1, %c0_2] : memref<32x16xbf16, #tpu.memory_space<vmem>>, vector<32x16xbf16>
    %cst = arith.constant dense<0.000000e+00> : vector<16x16xf32>
    %8 = tpu.matmul %6, %7, %cst {dimension_numbers = #tpu.dot_dimension_numbers<[1], [0], [0], [1], [0, 0, 1, 1], [], []>} : vector<16x32xbf16>, vector<32x16xbf16>, vector<16x16xf32> -> vector<16x16xf32>
    %cst_3 = arith.constant 0.000000e+00 : f32
    %9 = vector.broadcast %cst_3 : f32 to vector<2x16xf32>
    %10 = vector.extract_strided_slice %8 {offsets = [0, 0], sizes = [2, 16], strides = [1, 1]} : vector<16x16xf32> to vector<2x16xf32>
    %11 = arith.maximumf %9, %10 : vector<2x16xf32>
    %12 = vector.extract_strided_slice %8 {offsets = [2, 0], sizes = [2, 16], strides = [1, 1]} : vector<16x16xf32> to vector<2x16xf32>
    %13 = arith.maximumf %11, %12 : vector<2x16xf32>
    %14 = vector.extract_strided_slice %8 {offsets = [4, 0], sizes = [2, 16], strides = [1, 1]} : vector<16x16xf32> to vector<2x16xf32>
    %15 = arith.maximumf %13, %14 : vector<2x16xf32>
    %16 = vector.extract_strided_slice %8 {offsets = [6, 0], sizes = [2, 16], strides = [1, 1]} : vector<16x16xf32> to vector<2x16xf32>
    %17 = arith.maximumf %15, %16 : vector<2x16xf32>
    %18 = vector.extract_strided_slice %8 {offsets = [8, 0], sizes = [2, 16], strides = [1, 1]} : vector<16x16xf32> to vector<2x16xf32>
    %19 = arith.maximumf %17, %18 : vector<2x16xf32>
    %20 = vector.extract_strided_slice %8 {offsets = [10, 0], sizes = [2, 16], strides = [1, 1]} : vector<16x16xf32> to vector<2x16xf32>
    %21 = arith.maximumf %19, %20 : vector<2x16xf32>
    %22 = vector.extract_strided_slice %8 {offsets = [12, 0], sizes = [2, 16], strides = [1, 1]} : vector<16x16xf32> to vector<2x16xf32>
    %23 = arith.maximumf %21, %22 : vector<2x16xf32>
    %24 = vector.extract_strided_slice %8 {offsets = [14, 0], sizes = [2, 16], strides = [1, 1]} : vector<16x16xf32> to vector<2x16xf32>
    %25 = arith.maximumf %23, %24 : vector<2x16xf32>
    %26 = arith.truncf %8 : vector<16x16xf32> to vector<16x16xbf16>
    %c0_4 = arith.constant 0 : index
    %c0_5 = arith.constant 0 : index
    %27 = vector.load %arg3[%c0_4, %c0_5] : memref<16x512xbf16, #tpu.memory_space<vmem>>, vector<16x512xbf16>
    %cst_6 = arith.constant dense<0.000000e+00> : vector<16x512xf32>
    %28 = tpu.matmul %26, %27, %cst_6 {dimension_numbers = #tpu.dot_dimension_numbers<[1], [0], [0], [1], [0, 0, 1, 1], [], []>} : vector<16x16xbf16>, vector<16x512xbf16>, vector<16x512xf32> -> vector<16x512xf32>
    %c0_7 = arith.constant 0 : index
    %c0_8 = arith.constant 0 : index
    %29 = vector.load %arg5[%c0_7, %c0_8] : memref<1x512xf32, #tpu.memory_space<vmem>>, vector<1x512xf32>
    %30 = vector.broadcast %29 : vector<1x512xf32> to vector<16x512xf32>
    %31 = arith.addf %28, %30 : vector<16x512xf32>
    %32 = tpu.iota {dimensions = array<i32: 1>} : vector<2x512xi32>
    %c128_i32 = arith.constant 128 : i32
    %c0_i32 = arith.constant 0 : i32
    %33 = arith.cmpi eq, %c128_i32, %c0_i32 : i32
    %c1_i32 = arith.constant 1 : i32
    %34 = arith.select %33, %c1_i32, %c128_i32 : i32
    %35 = vector.broadcast %34 : i32 to vector<2x512xi32>
    %36 = arith.remsi %32, %35 : vector<2x512xi32>
    %c0_i32_9 = arith.constant 0 : i32
    %37 = vector.broadcast %c0_i32_9 : i32 to vector<2x512xi32>
    %38 = arith.cmpi ne, %36, %37 : vector<2x512xi32>
    %c0_i32_10 = arith.constant 0 : i32
    %39 = vector.broadcast %c0_i32_10 : i32 to vector<2x512xi32>
    %40 = arith.cmpi slt, %36, %39 : vector<2x512xi32>
    %c0_i32_11 = arith.constant 0 : i32
    %41 = arith.cmpi slt, %34, %c0_i32_11 : i32
    %42 = vector.broadcast %41 : i1 to vector<2x512xi1>
    %43 = vector.broadcast %42 : vector<2x512xi1> to vector<2x512xi1>
    %44 = arith.xori %40, %43 : vector<2x512xi1>
    %45 = arith.andi %44, %38 : vector<2x512xi1>
    %46 = vector.broadcast %34 : i32 to vector<2x512xi32>
    %47 = arith.addi %36, %46 : vector<2x512xi32>
    %48 = arith.select %45, %47, %36 : vector<2x512xi1>, vector<2x512xi32>
    %c64_i32 = arith.constant 64 : i32
    %49 = vector.broadcast %c64_i32 : i32 to vector<2x512xi32>
    %50 = arith.cmpi slt, %48, %49 : vector<2x512xi32>
    %51 = vector.extract_strided_slice %31 {offsets = [0, 0], sizes = [2, 512], strides = [1, 1]} : vector<16x512xf32> to vector<2x512xf32>
    %52 = vector.extract_strided_slice %31 {offsets = [14, 0], sizes = [2, 512], strides = [1, 1]} : vector<16x512xf32> to vector<2x512xf32>
    %53 = arith.select %50, %51, %52 : vector<2x512xi1>, vector<2x512xf32>
    %54 = vector.extract_strided_slice %31 {offsets = [2, 0], sizes = [2, 512], strides = [1, 1]} : vector<16x512xf32> to vector<2x512xf32>
    %55 = vector.extract_strided_slice %31 {offsets = [12, 0], sizes = [2, 512], strides = [1, 1]} : vector<16x512xf32> to vector<2x512xf32>
    %56 = arith.select %50, %54, %55 : vector<2x512xi1>, vector<2x512xf32>
    %57 = vector.extract_strided_slice %31 {offsets = [4, 0], sizes = [2, 512], strides = [1, 1]} : vector<16x512xf32> to vector<2x512xf32>
    %58 = vector.extract_strided_slice %31 {offsets = [10, 0], sizes = [2, 512], strides = [1, 1]} : vector<16x512xf32> to vector<2x512xf32>
    %59 = arith.select %50, %57, %58 : vector<2x512xi1>, vector<2x512xf32>
    %60 = vector.extract_strided_slice %31 {offsets = [6, 0], sizes = [2, 512], strides = [1, 1]} : vector<16x512xf32> to vector<2x512xf32>
    %61 = vector.extract_strided_slice %31 {offsets = [8, 0], sizes = [2, 512], strides = [1, 1]} : vector<16x512xf32> to vector<2x512xf32>
    %62 = arith.select %50, %60, %61 : vector<2x512xi1>, vector<2x512xf32>
    %63 = vector.extract_strided_slice %31 {offsets = [8, 0], sizes = [2, 512], strides = [1, 1]} : vector<16x512xf32> to vector<2x512xf32>
    %64 = vector.extract_strided_slice %31 {offsets = [6, 0], sizes = [2, 512], strides = [1, 1]} : vector<16x512xf32> to vector<2x512xf32>
    %65 = arith.select %50, %63, %64 : vector<2x512xi1>, vector<2x512xf32>
    %66 = vector.extract_strided_slice %31 {offsets = [10, 0], sizes = [2, 512], strides = [1, 1]} : vector<16x512xf32> to vector<2x512xf32>
    %67 = vector.extract_strided_slice %31 {offsets = [4, 0], sizes = [2, 512], strides = [1, 1]} : vector<16x512xf32> to vector<2x512xf32>
    %68 = arith.select %50, %66, %67 : vector<2x512xi1>, vector<2x512xf32>
    %69 = vector.extract_strided_slice %31 {offsets = [12, 0], sizes = [2, 512], strides = [1, 1]} : vector<16x512xf32> to vector<2x512xf32>
    %70 = vector.extract_strided_slice %31 {offsets = [2, 0], sizes = [2, 512], strides = [1, 1]} : vector<16x512xf32> to vector<2x512xf32>
    %71 = arith.select %50, %69, %70 : vector<2x512xi1>, vector<2x512xf32>
    %72 = vector.extract_strided_slice %31 {offsets = [14, 0], sizes = [2, 512], strides = [1, 1]} : vector<16x512xf32> to vector<2x512xf32>
    %73 = vector.extract_strided_slice %31 {offsets = [0, 0], sizes = [2, 512], strides = [1, 1]} : vector<16x512xf32> to vector<2x512xf32>
    %74 = arith.select %50, %72, %73 : vector<2x512xi1>, vector<2x512xf32>
    %cst_12 = arith.constant 0.000000e+00 : f32
    %75 = vector.broadcast %cst_12 : f32 to vector<2x128xf32>
    %cst_13 = arith.constant 0.000000e+00 : f32
    %76 = vector.broadcast %cst_13 : f32 to vector<2x128xf32>
    %cst_14 = arith.constant 0.000000e+00 : f32
    %77 = vector.broadcast %cst_14 : f32 to vector<2x128xf32>
    %c0_15 = arith.constant 0 : index
    %c0_16 = arith.constant 0 : index
    %78 = vector.load %arg4[%c0_15, %c0_16] : memref<128x512xbf16, #tpu.memory_space<vmem>>, vector<128x512xbf16>
    %79 = arith.truncf %75 : vector<2x128xf32> to vector<2x128xbf16>
    %cst_17 = arith.constant dense<0.000000e+00> : vector<2x512xf32>
    %80 = tpu.matmul %79, %78, %cst_17 {dimension_numbers = #tpu.dot_dimension_numbers<[1], [0], [0], [1], [0, 0, 1, 1], [], []>} : vector<2x128xbf16>, vector<128x512xbf16>, vector<2x512xf32> -> vector<2x512xf32>
    %81 = arith.addf %80, %53 : vector<2x512xf32>
    %82 = vector.extract_strided_slice %81 {offsets = [0, 0], sizes = [2, 128], strides = [1, 1]} : vector<2x512xf32> to vector<2x128xf32>
    %83 = arith.negf %82 : vector<2x128xf32>
    %84 = math.exp %83 : vector<2x128xf32>
    %cst_18 = arith.constant 1.000000e+00 : f32
    %85 = vector.broadcast %cst_18 : f32 to vector<2x128xf32>
    %86 = arith.addf %85, %84 : vector<2x128xf32>
    %87 = arith.divf %85, %86 : vector<2x128xf32>
    %88 = vector.extract_strided_slice %81 {offsets = [0, 128], sizes = [2, 128], strides = [1, 1]} : vector<2x512xf32> to vector<2x128xf32>
    %89 = arith.negf %88 : vector<2x128xf32>
    %90 = math.exp %89 : vector<2x128xf32>
    %cst_19 = arith.constant 1.000000e+00 : f32
    %91 = vector.broadcast %cst_19 : f32 to vector<2x128xf32>
    %92 = arith.addf %91, %90 : vector<2x128xf32>
    %93 = arith.divf %91, %92 : vector<2x128xf32>
    %94 = vector.extract_strided_slice %81 {offsets = [0, 256], sizes = [2, 128], strides = [1, 1]} : vector<2x512xf32> to vector<2x128xf32>
    %95 = math.tanh %94 : vector<2x128xf32>
    %96 = vector.extract_strided_slice %81 {offsets = [0, 384], sizes = [2, 128], strides = [1, 1]} : vector<2x512xf32> to vector<2x128xf32>
    %97 = arith.negf %96 : vector<2x128xf32>
    %98 = math.exp %97 : vector<2x128xf32>
    %cst_20 = arith.constant 1.000000e+00 : f32
    %99 = vector.broadcast %cst_20 : f32 to vector<2x128xf32>
    %100 = arith.addf %99, %98 : vector<2x128xf32>
    %101 = arith.divf %99, %100 : vector<2x128xf32>
    %102 = arith.mulf %93, %76 : vector<2x128xf32>
    %103 = arith.mulf %87, %95 : vector<2x128xf32>
    %104 = arith.addf %102, %103 : vector<2x128xf32>
    %105 = math.tanh %104 : vector<2x128xf32>
    %106 = arith.mulf %101, %105 : vector<2x128xf32>
    %107 = arith.maximumf %77, %106 : vector<2x128xf32>
    %108 = arith.truncf %106 : vector<2x128xf32> to vector<2x128xbf16>
    %cst_21 = arith.constant dense<0.000000e+00> : vector<2x512xf32>
    %109 = tpu.matmul %108, %78, %cst_21 {dimension_numbers = #tpu.dot_dimension_numbers<[1], [0], [0], [1], [0, 0, 1, 1], [], []>} : vector<2x128xbf16>, vector<128x512xbf16>, vector<2x512xf32> -> vector<2x512xf32>
    %110 = arith.addf %109, %56 : vector<2x512xf32>
    %111 = vector.extract_strided_slice %110 {offsets = [0, 0], sizes = [2, 128], strides = [1, 1]} : vector<2x512xf32> to vector<2x128xf32>
    %112 = arith.negf %111 : vector<2x128xf32>
    %113 = math.exp %112 : vector<2x128xf32>
    %cst_22 = arith.constant 1.000000e+00 : f32
    %114 = vector.broadcast %cst_22 : f32 to vector<2x128xf32>
    %115 = arith.addf %114, %113 : vector<2x128xf32>
    %116 = arith.divf %114, %115 : vector<2x128xf32>
    %117 = vector.extract_strided_slice %110 {offsets = [0, 128], sizes = [2, 128], strides = [1, 1]} : vector<2x512xf32> to vector<2x128xf32>
    %118 = arith.negf %117 : vector<2x128xf32>
    %119 = math.exp %118 : vector<2x128xf32>
    %cst_23 = arith.constant 1.000000e+00 : f32
    %120 = vector.broadcast %cst_23 : f32 to vector<2x128xf32>
    %121 = arith.addf %120, %119 : vector<2x128xf32>
    %122 = arith.divf %120, %121 : vector<2x128xf32>
    %123 = vector.extract_strided_slice %110 {offsets = [0, 256], sizes = [2, 128], strides = [1, 1]} : vector<2x512xf32> to vector<2x128xf32>
    %124 = math.tanh %123 : vector<2x128xf32>
    %125 = vector.extract_strided_slice %110 {offsets = [0, 384], sizes = [2, 128], strides = [1, 1]} : vector<2x512xf32> to vector<2x128xf32>
    %126 = arith.negf %125 : vector<2x128xf32>
    %127 = math.exp %126 : vector<2x128xf32>
    %cst_24 = arith.constant 1.000000e+00 : f32
    %128 = vector.broadcast %cst_24 : f32 to vector<2x128xf32>
    %129 = arith.addf %128, %127 : vector<2x128xf32>
    %130 = arith.divf %128, %129 : vector<2x128xf32>
    %131 = arith.mulf %122, %104 : vector<2x128xf32>
    %132 = arith.mulf %116, %124 : vector<2x128xf32>
    %133 = arith.addf %131, %132 : vector<2x128xf32>
    %134 = math.tanh %133 : vector<2x128xf32>
    %135 = arith.mulf %130, %134 : vector<2x128xf32>
    %136 = arith.maximumf %107, %135 : vector<2x128xf32>
    %137 = arith.truncf %135 : vector<2x128xf32> to vector<2x128xbf16>
    %cst_25 = arith.constant dense<0.000000e+00> : vector<2x512xf32>
    %138 = tpu.matmul %137, %78, %cst_25 {dimension_numbers = #tpu.dot_dimension_numbers<[1], [0], [0], [1], [0, 0, 1, 1], [], []>} : vector<2x128xbf16>, vector<128x512xbf16>, vector<2x512xf32> -> vector<2x512xf32>
    %139 = arith.addf %138, %59 : vector<2x512xf32>
    %140 = vector.extract_strided_slice %139 {offsets = [0, 0], sizes = [2, 128], strides = [1, 1]} : vector<2x512xf32> to vector<2x128xf32>
    %141 = arith.negf %140 : vector<2x128xf32>
    %142 = math.exp %141 : vector<2x128xf32>
    %cst_26 = arith.constant 1.000000e+00 : f32
    %143 = vector.broadcast %cst_26 : f32 to vector<2x128xf32>
    %144 = arith.addf %143, %142 : vector<2x128xf32>
    %145 = arith.divf %143, %144 : vector<2x128xf32>
    %146 = vector.extract_strided_slice %139 {offsets = [0, 128], sizes = [2, 128], strides = [1, 1]} : vector<2x512xf32> to vector<2x128xf32>
    %147 = arith.negf %146 : vector<2x128xf32>
    %148 = math.exp %147 : vector<2x128xf32>
    %cst_27 = arith.constant 1.000000e+00 : f32
    %149 = vector.broadcast %cst_27 : f32 to vector<2x128xf32>
    %150 = arith.addf %149, %148 : vector<2x128xf32>
    %151 = arith.divf %149, %150 : vector<2x128xf32>
    %152 = vector.extract_strided_slice %139 {offsets = [0, 256], sizes = [2, 128], strides = [1, 1]} : vector<2x512xf32> to vector<2x128xf32>
    %153 = math.tanh %152 : vector<2x128xf32>
    %154 = vector.extract_strided_slice %139 {offsets = [0, 384], sizes = [2, 128], strides = [1, 1]} : vector<2x512xf32> to vector<2x128xf32>
    %155 = arith.negf %154 : vector<2x128xf32>
    %156 = math.exp %155 : vector<2x128xf32>
    %cst_28 = arith.constant 1.000000e+00 : f32
    %157 = vector.broadcast %cst_28 : f32 to vector<2x128xf32>
    %158 = arith.addf %157, %156 : vector<2x128xf32>
    %159 = arith.divf %157, %158 : vector<2x128xf32>
    %160 = arith.mulf %151, %133 : vector<2x128xf32>
    %161 = arith.mulf %145, %153 : vector<2x128xf32>
    %162 = arith.addf %160, %161 : vector<2x128xf32>
    %163 = math.tanh %162 : vector<2x128xf32>
    %164 = arith.mulf %159, %163 : vector<2x128xf32>
    %165 = arith.maximumf %136, %164 : vector<2x128xf32>
    %166 = arith.truncf %164 : vector<2x128xf32> to vector<2x128xbf16>
    %cst_29 = arith.constant dense<0.000000e+00> : vector<2x512xf32>
    %167 = tpu.matmul %166, %78, %cst_29 {dimension_numbers = #tpu.dot_dimension_numbers<[1], [0], [0], [1], [0, 0, 1, 1], [], []>} : vector<2x128xbf16>, vector<128x512xbf16>, vector<2x512xf32> -> vector<2x512xf32>
    %168 = arith.addf %167, %62 : vector<2x512xf32>
    %169 = vector.extract_strided_slice %168 {offsets = [0, 0], sizes = [2, 128], strides = [1, 1]} : vector<2x512xf32> to vector<2x128xf32>
    %170 = arith.negf %169 : vector<2x128xf32>
    %171 = math.exp %170 : vector<2x128xf32>
    %cst_30 = arith.constant 1.000000e+00 : f32
    %172 = vector.broadcast %cst_30 : f32 to vector<2x128xf32>
    %173 = arith.addf %172, %171 : vector<2x128xf32>
    %174 = arith.divf %172, %173 : vector<2x128xf32>
    %175 = vector.extract_strided_slice %168 {offsets = [0, 128], sizes = [2, 128], strides = [1, 1]} : vector<2x512xf32> to vector<2x128xf32>
    %176 = arith.negf %175 : vector<2x128xf32>
    %177 = math.exp %176 : vector<2x128xf32>
    %cst_31 = arith.constant 1.000000e+00 : f32
    %178 = vector.broadcast %cst_31 : f32 to vector<2x128xf32>
    %179 = arith.addf %178, %177 : vector<2x128xf32>
    %180 = arith.divf %178, %179 : vector<2x128xf32>
    %181 = vector.extract_strided_slice %168 {offsets = [0, 256], sizes = [2, 128], strides = [1, 1]} : vector<2x512xf32> to vector<2x128xf32>
    %182 = math.tanh %181 : vector<2x128xf32>
    %183 = vector.extract_strided_slice %168 {offsets = [0, 384], sizes = [2, 128], strides = [1, 1]} : vector<2x512xf32> to vector<2x128xf32>
    %184 = arith.negf %183 : vector<2x128xf32>
    %185 = math.exp %184 : vector<2x128xf32>
    %cst_32 = arith.constant 1.000000e+00 : f32
    %186 = vector.broadcast %cst_32 : f32 to vector<2x128xf32>
    %187 = arith.addf %186, %185 : vector<2x128xf32>
    %188 = arith.divf %186, %187 : vector<2x128xf32>
    %189 = arith.mulf %180, %162 : vector<2x128xf32>
    %190 = arith.mulf %174, %182 : vector<2x128xf32>
    %191 = arith.addf %189, %190 : vector<2x128xf32>
    %192 = math.tanh %191 : vector<2x128xf32>
    %193 = arith.mulf %188, %192 : vector<2x128xf32>
    %194 = arith.maximumf %165, %193 : vector<2x128xf32>
    %195 = arith.truncf %193 : vector<2x128xf32> to vector<2x128xbf16>
    %cst_33 = arith.constant dense<0.000000e+00> : vector<2x512xf32>
    %196 = tpu.matmul %195, %78, %cst_33 {dimension_numbers = #tpu.dot_dimension_numbers<[1], [0], [0], [1], [0, 0, 1, 1], [], []>} : vector<2x128xbf16>, vector<128x512xbf16>, vector<2x512xf32> -> vector<2x512xf32>
    %197 = arith.addf %196, %65 : vector<2x512xf32>
    %198 = vector.extract_strided_slice %197 {offsets = [0, 0], sizes = [2, 128], strides = [1, 1]} : vector<2x512xf32> to vector<2x128xf32>
    %199 = arith.negf %198 : vector<2x128xf32>
    %200 = math.exp %199 : vector<2x128xf32>
    %cst_34 = arith.constant 1.000000e+00 : f32
    %201 = vector.broadcast %cst_34 : f32 to vector<2x128xf32>
    %202 = arith.addf %201, %200 : vector<2x128xf32>
    %203 = arith.divf %201, %202 : vector<2x128xf32>
    %204 = vector.extract_strided_slice %197 {offsets = [0, 128], sizes = [2, 128], strides = [1, 1]} : vector<2x512xf32> to vector<2x128xf32>
    %205 = arith.negf %204 : vector<2x128xf32>
    %206 = math.exp %205 : vector<2x128xf32>
    %cst_35 = arith.constant 1.000000e+00 : f32
    %207 = vector.broadcast %cst_35 : f32 to vector<2x128xf32>
    %208 = arith.addf %207, %206 : vector<2x128xf32>
    %209 = arith.divf %207, %208 : vector<2x128xf32>
    %210 = vector.extract_strided_slice %197 {offsets = [0, 256], sizes = [2, 128], strides = [1, 1]} : vector<2x512xf32> to vector<2x128xf32>
    %211 = math.tanh %210 : vector<2x128xf32>
    %212 = vector.extract_strided_slice %197 {offsets = [0, 384], sizes = [2, 128], strides = [1, 1]} : vector<2x512xf32> to vector<2x128xf32>
    %213 = arith.negf %212 : vector<2x128xf32>
    %214 = math.exp %213 : vector<2x128xf32>
    %cst_36 = arith.constant 1.000000e+00 : f32
    %215 = vector.broadcast %cst_36 : f32 to vector<2x128xf32>
    %216 = arith.addf %215, %214 : vector<2x128xf32>
    %217 = arith.divf %215, %216 : vector<2x128xf32>
    %218 = arith.mulf %209, %191 : vector<2x128xf32>
    %219 = arith.mulf %203, %211 : vector<2x128xf32>
    %220 = arith.addf %218, %219 : vector<2x128xf32>
    %221 = math.tanh %220 : vector<2x128xf32>
    %222 = arith.mulf %217, %221 : vector<2x128xf32>
    %223 = arith.maximumf %194, %222 : vector<2x128xf32>
    %224 = arith.truncf %222 : vector<2x128xf32> to vector<2x128xbf16>
    %cst_37 = arith.constant dense<0.000000e+00> : vector<2x512xf32>
    %225 = tpu.matmul %224, %78, %cst_37 {dimension_numbers = #tpu.dot_dimension_numbers<[1], [0], [0], [1], [0, 0, 1, 1], [], []>} : vector<2x128xbf16>, vector<128x512xbf16>, vector<2x512xf32> -> vector<2x512xf32>
    %226 = arith.addf %225, %68 : vector<2x512xf32>
    %227 = vector.extract_strided_slice %226 {offsets = [0, 0], sizes = [2, 128], strides = [1, 1]} : vector<2x512xf32> to vector<2x128xf32>
    %228 = arith.negf %227 : vector<2x128xf32>
    %229 = math.exp %228 : vector<2x128xf32>
    %cst_38 = arith.constant 1.000000e+00 : f32
    %230 = vector.broadcast %cst_38 : f32 to vector<2x128xf32>
    %231 = arith.addf %230, %229 : vector<2x128xf32>
    %232 = arith.divf %230, %231 : vector<2x128xf32>
    %233 = vector.extract_strided_slice %226 {offsets = [0, 128], sizes = [2, 128], strides = [1, 1]} : vector<2x512xf32> to vector<2x128xf32>
    %234 = arith.negf %233 : vector<2x128xf32>
    %235 = math.exp %234 : vector<2x128xf32>
    %cst_39 = arith.constant 1.000000e+00 : f32
    %236 = vector.broadcast %cst_39 : f32 to vector<2x128xf32>
    %237 = arith.addf %236, %235 : vector<2x128xf32>
    %238 = arith.divf %236, %237 : vector<2x128xf32>
    %239 = vector.extract_strided_slice %226 {offsets = [0, 256], sizes = [2, 128], strides = [1, 1]} : vector<2x512xf32> to vector<2x128xf32>
    %240 = math.tanh %239 : vector<2x128xf32>
    %241 = vector.extract_strided_slice %226 {offsets = [0, 384], sizes = [2, 128], strides = [1, 1]} : vector<2x512xf32> to vector<2x128xf32>
    %242 = arith.negf %241 : vector<2x128xf32>
    %243 = math.exp %242 : vector<2x128xf32>
    %cst_40 = arith.constant 1.000000e+00 : f32
    %244 = vector.broadcast %cst_40 : f32 to vector<2x128xf32>
    %245 = arith.addf %244, %243 : vector<2x128xf32>
    %246 = arith.divf %244, %245 : vector<2x128xf32>
    %247 = arith.mulf %238, %220 : vector<2x128xf32>
    %248 = arith.mulf %232, %240 : vector<2x128xf32>
    %249 = arith.addf %247, %248 : vector<2x128xf32>
    %250 = math.tanh %249 : vector<2x128xf32>
    %251 = arith.mulf %246, %250 : vector<2x128xf32>
    %252 = arith.maximumf %223, %251 : vector<2x128xf32>
    %253 = arith.truncf %251 : vector<2x128xf32> to vector<2x128xbf16>
    %cst_41 = arith.constant dense<0.000000e+00> : vector<2x512xf32>
    %254 = tpu.matmul %253, %78, %cst_41 {dimension_numbers = #tpu.dot_dimension_numbers<[1], [0], [0], [1], [0, 0, 1, 1], [], []>} : vector<2x128xbf16>, vector<128x512xbf16>, vector<2x512xf32> -> vector<2x512xf32>
    %255 = arith.addf %254, %71 : vector<2x512xf32>
    %256 = vector.extract_strided_slice %255 {offsets = [0, 0], sizes = [2, 128], strides = [1, 1]} : vector<2x512xf32> to vector<2x128xf32>
    %257 = arith.negf %256 : vector<2x128xf32>
    %258 = math.exp %257 : vector<2x128xf32>
    %cst_42 = arith.constant 1.000000e+00 : f32
    %259 = vector.broadcast %cst_42 : f32 to vector<2x128xf32>
    %260 = arith.addf %259, %258 : vector<2x128xf32>
    %261 = arith.divf %259, %260 : vector<2x128xf32>
    %262 = vector.extract_strided_slice %255 {offsets = [0, 128], sizes = [2, 128], strides = [1, 1]} : vector<2x512xf32> to vector<2x128xf32>
    %263 = arith.negf %262 : vector<2x128xf32>
    %264 = math.exp %263 : vector<2x128xf32>
    %cst_43 = arith.constant 1.000000e+00 : f32
    %265 = vector.broadcast %cst_43 : f32 to vector<2x128xf32>
    %266 = arith.addf %265, %264 : vector<2x128xf32>
    %267 = arith.divf %265, %266 : vector<2x128xf32>
    %268 = vector.extract_strided_slice %255 {offsets = [0, 256], sizes = [2, 128], strides = [1, 1]} : vector<2x512xf32> to vector<2x128xf32>
    %269 = math.tanh %268 : vector<2x128xf32>
    %270 = vector.extract_strided_slice %255 {offsets = [0, 384], sizes = [2, 128], strides = [1, 1]} : vector<2x512xf32> to vector<2x128xf32>
    %271 = arith.negf %270 : vector<2x128xf32>
    %272 = math.exp %271 : vector<2x128xf32>
    %cst_44 = arith.constant 1.000000e+00 : f32
    %273 = vector.broadcast %cst_44 : f32 to vector<2x128xf32>
    %274 = arith.addf %273, %272 : vector<2x128xf32>
    %275 = arith.divf %273, %274 : vector<2x128xf32>
    %276 = arith.mulf %267, %249 : vector<2x128xf32>
    %277 = arith.mulf %261, %269 : vector<2x128xf32>
    %278 = arith.addf %276, %277 : vector<2x128xf32>
    %279 = math.tanh %278 : vector<2x128xf32>
    %280 = arith.mulf %275, %279 : vector<2x128xf32>
    %281 = arith.maximumf %252, %280 : vector<2x128xf32>
    %282 = arith.truncf %280 : vector<2x128xf32> to vector<2x128xbf16>
    %cst_45 = arith.constant dense<0.000000e+00> : vector<2x512xf32>
    %283 = tpu.matmul %282, %78, %cst_45 {dimension_numbers = #tpu.dot_dimension_numbers<[1], [0], [0], [1], [0, 0, 1, 1], [], []>} : vector<2x128xbf16>, vector<128x512xbf16>, vector<2x512xf32> -> vector<2x512xf32>
    %284 = arith.addf %283, %74 : vector<2x512xf32>
    %285 = vector.extract_strided_slice %284 {offsets = [0, 0], sizes = [2, 128], strides = [1, 1]} : vector<2x512xf32> to vector<2x128xf32>
    %286 = arith.negf %285 : vector<2x128xf32>
    %287 = math.exp %286 : vector<2x128xf32>
    %cst_46 = arith.constant 1.000000e+00 : f32
    %288 = vector.broadcast %cst_46 : f32 to vector<2x128xf32>
    %289 = arith.addf %288, %287 : vector<2x128xf32>
    %290 = arith.divf %288, %289 : vector<2x128xf32>
    %291 = vector.extract_strided_slice %284 {offsets = [0, 128], sizes = [2, 128], strides = [1, 1]} : vector<2x512xf32> to vector<2x128xf32>
    %292 = arith.negf %291 : vector<2x128xf32>
    %293 = math.exp %292 : vector<2x128xf32>
    %cst_47 = arith.constant 1.000000e+00 : f32
    %294 = vector.broadcast %cst_47 : f32 to vector<2x128xf32>
    %295 = arith.addf %294, %293 : vector<2x128xf32>
    %296 = arith.divf %294, %295 : vector<2x128xf32>
    %297 = vector.extract_strided_slice %284 {offsets = [0, 256], sizes = [2, 128], strides = [1, 1]} : vector<2x512xf32> to vector<2x128xf32>
    %298 = math.tanh %297 : vector<2x128xf32>
    %299 = vector.extract_strided_slice %284 {offsets = [0, 384], sizes = [2, 128], strides = [1, 1]} : vector<2x512xf32> to vector<2x128xf32>
    %300 = arith.negf %299 : vector<2x128xf32>
    %301 = math.exp %300 : vector<2x128xf32>
    %cst_48 = arith.constant 1.000000e+00 : f32
    %302 = vector.broadcast %cst_48 : f32 to vector<2x128xf32>
    %303 = arith.addf %302, %301 : vector<2x128xf32>
    %304 = arith.divf %302, %303 : vector<2x128xf32>
    %305 = arith.mulf %296, %278 : vector<2x128xf32>
    %306 = arith.mulf %290, %298 : vector<2x128xf32>
    %307 = arith.addf %305, %306 : vector<2x128xf32>
    %308 = math.tanh %307 : vector<2x128xf32>
    %309 = arith.mulf %304, %308 : vector<2x128xf32>
    %310 = arith.maximumf %281, %309 : vector<2x128xf32>
    %311 = arith.truncf %310 : vector<2x128xf32> to vector<2x128xbf16>
    %c0_49 = arith.constant 0 : index
    %c0_50 = arith.constant 0 : index
    %312 = vector.load %arg6[%c0_49, %c0_50] : memref<128x4xbf16, #tpu.memory_space<vmem>>, vector<128x4xbf16>
    %cst_51 = arith.constant dense<0.000000e+00> : vector<2x4xf32>
    %313 = tpu.matmul %311, %312, %cst_51 {dimension_numbers = #tpu.dot_dimension_numbers<[1], [0], [0], [1], [0, 0, 1, 1], [], []>} : vector<2x128xbf16>, vector<128x4xbf16>, vector<2x4xf32> -> vector<2x4xf32>
    %314 = arith.truncf %25 : vector<2x16xf32> to vector<2x16xbf16>
    %c0_52 = arith.constant 0 : index
    %c0_53 = arith.constant 0 : index
    %315 = vector.load %arg7[%c0_52, %c0_53] : memref<16x4xbf16, #tpu.memory_space<vmem>>, vector<16x4xbf16>
    %cst_54 = arith.constant dense<0.000000e+00> : vector<2x4xf32>
    %316 = tpu.matmul %314, %315, %cst_54 {dimension_numbers = #tpu.dot_dimension_numbers<[1], [0], [0], [1], [0, 0, 1, 1], [], []>} : vector<2x16xbf16>, vector<16x4xbf16>, vector<2x4xf32> -> vector<2x4xf32>
    %317 = arith.addf %313, %316 : vector<2x4xf32>
    %c0_55 = arith.constant 0 : index
    %c0_56 = arith.constant 0 : index
    %318 = vector.load %arg8[%c0_55, %c0_56] : memref<1x4xf32, #tpu.memory_space<vmem>>, vector<1x4xf32>
    %319 = vector.broadcast %318 : vector<1x4xf32> to vector<2x4xf32>
    %320 = arith.addf %317, %319 : vector<2x4xf32>
    %cst_57 = arith.constant dense<0xFF800000> : vector<2xf32>
    %321 = vector.multi_reduction <maximumf>, %320, %cst_57 [1] : vector<2x4xf32> to vector<2xf32>
    %322 = vector.shape_cast %321 : vector<2xf32> to vector<2x1xf32>
    %323 = vector.broadcast %322 : vector<2x1xf32> to vector<2x4xf32>
    %324 = arith.subf %320, %323 : vector<2x4xf32>
    %325 = math.exp %324 : vector<2x4xf32>
    %cst_58 = arith.constant dense<0.000000e+00> : vector<2xf32>
    %326 = vector.multi_reduction <add>, %325, %cst_58 [1] : vector<2x4xf32> to vector<2xf32>
    %327 = vector.shape_cast %326 : vector<2xf32> to vector<2x1xf32>
    %328 = tpu.reciprocal %327 {approx = true} : vector<2x1xf32> -> vector<2x1xf32>
    %329 = vector.broadcast %328 : vector<2x1xf32> to vector<2x4xf32>
    %330 = arith.mulf %325, %329 : vector<2x4xf32>
    %c0_59 = arith.constant 0 : index
    %c0_60 = arith.constant 0 : index
    %331 = vector.load %arg9[%c0_59, %c0_60] : memref<2x4xf32, #tpu.memory_space<vmem>>, vector<2x4xf32>
    tpu.vector_store %arg9[%c0_59, %c0_60], %330 {strides = array<i32>} : memref<2x4xf32, #tpu.memory_space<vmem>>, vector<2x4xf32>,
    return
  }
  func.func @transform_0(%arg0: i32) -> (i32, i32) {
    %c0_i32 = arith.constant 0 : i32
    %c0_i32_0 = arith.constant 0 : i32
    %c0_i32_1 = arith.constant 0 : i32
    return %c0_i32, %c0_i32_0 : i32, i32
  }
  func.func @transform_1(%arg0: i32) -> (i32, i32) {
    %c0_i32 = arith.constant 0 : i32
    %c0_i32_0 = arith.constant 0 : i32
    %c0_i32_1 = arith.constant 0 : i32
    return %c0_i32, %c0_i32_0 : i32, i32
  }
  func.func @transform_2(%arg0: i32) -> (i32, i32) {
    %c0_i32 = arith.constant 0 : i32
    %c0_i32_0 = arith.constant 0 : i32
    %c0_i32_1 = arith.constant 0 : i32
    return %c0_i32, %c0_i32_0 : i32, i32
  }
  func.func @transform_3(%arg0: i32) -> (i32, i32) {
    %c0_i32 = arith.constant 0 : i32
    %c0_i32_0 = arith.constant 0 : i32
    %c0_i32_1 = arith.constant 0 : i32
    return %c0_i32, %c0_i32_0 : i32, i32
  }
  func.func @transform_4(%arg0: i32) -> (i32, i32) {
    %c0_i32 = arith.constant 0 : i32
    %c0_i32_0 = arith.constant 0 : i32
    %c0_i32_1 = arith.constant 0 : i32
    return %c0_i32, %c0_i32_0 : i32, i32
  }
  func.func @transform_5(%arg0: i32) -> (i32, i32) {
    %c0_i32 = arith.constant 0 : i32
    %c0_i32_0 = arith.constant 0 : i32
    %c0_i32_1 = arith.constant 0 : i32
    return %c0_i32, %c0_i32_0 : i32, i32
  }
  func.func @transform_6(%arg0: i32) -> (i32, i32) {
    %c0_i32 = arith.constant 0 : i32
    %c0_i32_0 = arith.constant 0 : i32
    %c0_i32_1 = arith.constant 0 : i32
    return %c0_i32, %c0_i32_0 : i32, i32
  }
  func.func @transform_7(%arg0: i32) -> (i32, i32) {
    %c0_i32 = arith.constant 0 : i32
    %c0_i32_0 = arith.constant 0 : i32
    %c0_i32_1 = arith.constant 0 : i32
    return %c0_i32, %c0_i32_0 : i32, i32
  }
  func.func @transform_8(%arg0: i32) -> (i32, i32) {
    %c0_i32 = arith.constant 0 : i32
    %c0_i32_0 = arith.constant 0 : i32
    %c0_i32_1 = arith.constant 0 : i32
    return %c0_i32, %c0_i32_0 : i32, i32
  }
}

</mosaic_0001>

<llo_original>
// kernel: text_rcnn_forward.1
$region0: #{text_rcnn_forward.1}
  #allocation0 [shape = 'u32[]', space=smem, size = 0x4, offset = 0x4, fixed_abs, tag = 'smem constant byte address 0x4 - core index']
  #allocation1 [shape = 'u32[144,128]{1,0:T(1,128)}', space=vmem, size = 0x12000, scoped, tag = 'internal scratch']
  %s0 = inlined_call_operand.vmem [shape: s32[16,1], index: 0, kind: input, shape index: {}]
  %s1 = inlined_call_operand.vmem [shape: bf16[32,16], index: 1, kind: input, shape index: {}]
  %s2 = inlined_call_operand.vmem [shape: bf16[16,512], index: 2, kind: input, shape index: {}]
  %s3 = inlined_call_operand.hbm [shape: bf16[128,512], index: 3, kind: input, shape index: {}]
  %s4 = inlined_call_operand.vmem [shape: f32[1,512], index: 4, kind: input, shape index: {}]
  %s5 = inlined_call_operand.vmem [shape: bf16[128,4], index: 5, kind: input, shape index: {}]
  %s6 = inlined_call_operand.vmem [shape: bf16[16,4], index: 6, kind: input, shape index: {}]
  %s7 = inlined_call_operand.vmem [shape: f32[1,4], index: 7, kind: input, shape index: {}]
  %s8 = inlined_call_operand.hbm [shape: f32[2,4], index: 8, kind: output, shape index: {}]
  %s9 = sld [smem:[#allocation0]]
  $region46: #{text_rcnn_forward.1} parent=0
    _
  %s11 = ssub.s32 1, %s9
  %s12 = scalar_select 0, %s11, %s9
  $region1: #{text_rcnn_forward.1} parent=0
    #allocation2 [shape = 'u8[131072]{0}', space=vmem, size = 0x20000, scoped, tag = 'input window, operand 3, single buffered']
    #allocation3 [shape = 's32[1]{0}', space=sflag, size = 0x4, scoped, tag = 'scoped memory for text_rcnn_forward.1']
    #allocation4 [shape = 's32[1]{0}', space=sflag, size = 0x4, scoped, tag = 'scoped memory for text_rcnn_forward.1']
    #allocation5 [shape = 'u8[1024]{0}', space=vmem, size = 0x400, scoped, tag = 'output window, operand 0, single buffered']
    %13 = vsyncpa [#allocation3], 0
    %14 = vsyncpa [#allocation4], 0
    // Predicated region
    $region2: #{text_rcnn_forward.1} parent=1 // pred_check
      _
    $region3: #{text_rcnn_forward.1} parent=1 // pred_check_branch
      %16 = sbr.rel (0) target = $region5
    $region4: #{text_rcnn_forward.1} parent=1 // pred_region
      _
    $region5: #{text_rcnn_forward.1} parent=1 // pred_fallthru
      _
    // Predicated region
    $region6: #{text_rcnn_forward.1} parent=1 // pred_check
      _
    $region7: #{text_rcnn_forward.1} parent=1 // pred_check_branch
      %18 = sbr.rel (0) target = $region9
    $region8: #{text_rcnn_forward.1} parent=1 // pred_region
      _
    $region9: #{text_rcnn_forward.1} parent=1 // pred_fallthru
      _
    // Predicated region
    $region10: #{text_rcnn_forward.1} parent=1 // pred_check
      _
    $region11: #{text_rcnn_forward.1} parent=1 // pred_check_branch
      %20 = sbr.rel (0) target = $region13
    $region12: #{text_rcnn_forward.1} parent=1 // pred_region
      _
    $region13: #{text_rcnn_forward.1} parent=1 // pred_fallthru
      _
    // Predicated region
    $region14: #{text_rcnn_forward.1} parent=1 // pred_check
      _
    $region15: #{text_rcnn_forward.1} parent=1 // pred_check_branch
      %22 = sbr.rel (0) target = $region17
    $region16: #{text_rcnn_forward.1} parent=1 // pred_region
      %s24 = ssub.s32 4096, 4096
      %25 = vsyncadd [#allocation3], %s24
      %s26 = sshll.u32 [#allocation2], 4
      %s27 = int_to_ptr.vmem [resolvable:$true] %s26
      %32 = dma.hbm_to_vmem [thread:$0]  %s3, 4096, %s27, [#allocation3], 256, 256, 16
    $region17: #{text_rcnn_forward.1} parent=1 // pred_fallthru
      _
    // Predicated region
    $region18: #{text_rcnn_forward.1} parent=1 // pred_check
      _
    $region19: #{text_rcnn_forward.1} parent=1 // pred_check_branch
      %34 = sbr.rel (0) target = $region21
    $region20: #{text_rcnn_forward.1} parent=1 // pred_region
      _
    $region21: #{text_rcnn_forward.1} parent=1 // pred_fallthru
      _
    // Predicated region
    $region22: #{text_rcnn_forward.1} parent=1 // pred_check
      _
    $region23: #{text_rcnn_forward.1} parent=1 // pred_check_branch
      %36 = sbr.rel (0) target = $region25
    $region24: #{text_rcnn_forward.1} parent=1 // pred_region
      _
    $region25: #{text_rcnn_forward.1} parent=1 // pred_fallthru
      _
    // Predicated region
    $region26: #{text_rcnn_forward.1} parent=1 // pred_check
      _
    $region27: #{text_rcnn_forward.1} parent=1 // pred_check_branch
      %38 = sbr.rel (0) target = $region29
    $region28: #{text_rcnn_forward.1} parent=1 // pred_region
      _
    $region29: #{text_rcnn_forward.1} parent=1 // pred_fallthru
      _
    // Predicated region
    $region30: #{text_rcnn_forward.1} parent=1 // pred_check
      _
    $region31: #{text_rcnn_forward.1} parent=1 // pred_check_branch
      %40 = sbr.rel (0) target = $region33
    $region32: #{text_rcnn_forward.1} parent=1 // pred_region
      _
    $region33: #{text_rcnn_forward.1} parent=1 // pred_fallthru
      _
    // Predicated region
    $region34: #{text_rcnn_forward.1} parent=1 // pred_check
      _
    $region35: #{text_rcnn_forward.1} parent=1 // pred_check_branch
      %42 = sbr.rel (0) target = $region37
    $region36: #{text_rcnn_forward.1} parent=1 // pred_region
      %43 = dma.done [#allocation3], 4096
    $region37: #{text_rcnn_forward.1} parent=1 // pred_fallthru
      _
    %v45 = vld [vmem:[%s0] sm:$0xff]
    %v46 = vld [vmem:[%s0 + $0x8] sm:$0xff]
    %v47 = vlaneseq
    %v48 = vand.u32 %v47, 127
    %49 = vset.pattern.permute.xlu0 0
    %50 = vperm.xlu0 %49, %v45
    %v51 = vpop.permute.xlu0 %50
    %52 = vset.pattern.permute.xlu0 0
    %53 = vperm.xlu0 %52, %v46
    %v54 = vpop.permute.xlu0 %53
    %vm55 = vcmp.eq.s32.totalorder %v48, %v51
    %vm56 = vcmp.eq.s32.totalorder %v48, %v54
    %v57 = vsel %vm55, 1, 0
    %v58 = vsel %vm56, 1, 0
    %v59 = vcvt.s32.f32 %v57
    %v60 = vcvt.s32.f32 %v58
    %v61 = vpack.c.bf16 %v60, %v59
    %v62 = vld [vmem:[%s1] sm:$0xf]
    %v63 = vld [vmem:[%s1 + $0x4] sm:$0xf]
    %v64 = vld [vmem:[%s1 + $0x8] sm:$0xf]
    %v65 = vld [vmem:[%s1 + $0xc] sm:$0xf]
    %v70 = vunpack.c.l.b16 %v62
    %v71 = vunpack.c.l.b16 %v63
    %v72 = vunpack.c.l.b16 %v64
    %v73 = vunpack.c.l.b16 %v65
    %v74 = vpack.c.b16 %v71, %v70
    %v75 = vpack.c.b16 %v73, %v72
    %vm78 = vcmask 261120
    %v80 = vsel %vm78, %v61, 0
    %82 = vmatprep.subr.bf16.mxu0 0
    %83 = vmatpush1.bf16.msra.mxu0 %v74
    %84 = vmatprep.subr.bf16.mxu0 0
    %85 = vmatpush1.bf16.msra.mxu0 %v75
    %86 = vmatprep.subr.bf16.mxu0 0
    %87 = vmatpush1.bf16.msra.mxu0 0
    %88 = vmatprep.subr.bf16.mxu0 0
    %89 = vmatpush1.bf16.msra.mxu0 0
    %90 = vmatprep.subr.bf16.mxu0 0
    %91 = vmatpush1.bf16.msra.mxu0 0
    %92 = vmatprep.subr.bf16.mxu0 0
    %93 = vmatpush1.bf16.msra.mxu0 0
    %94 = vmatprep.subr.bf16.mxu0 0
    %95 = vmatpush1.bf16.msra.mxu0 0
    %96 = vmatprep.subr.bf16.mxu0 0
    %97 = vmatpush1.bf16.msra.mxu0 0
    %98 = vmatprep.subr.bf16.mxu0 0
    %99 = vmatpush1.bf16.msra.mxu0 0
    %100 = vmatprep.subr.bf16.mxu0 0
    %101 = vmatpush1.bf16.msra.mxu0 0
    %102 = vmatprep.subr.bf16.mxu0 0
    %103 = vmatpush1.bf16.msra.mxu0 0
    %104 = vmatprep.subr.bf16.mxu0 0
    %105 = vmatpush1.bf16.msra.mxu0 0
    %106 = vmatprep.subr.bf16.mxu0 0
    %107 = vmatpush1.bf16.msra.mxu0 0
    %108 = vmatprep.subr.bf16.mxu0 0
    %109 = vmatpush1.bf16.msra.mxu0 0
    %110 = vmatprep.subr.bf16.mxu0 0
    %111 = vmatpush1.bf16.msra.mxu0 0
    %112 = vmatprep.subr.bf16.mxu0 0
    %113 = vmatpush1.bf16.msra.mxu0 0
    %114 = vmatprep.mubr.bf16.mxu0 0
    %115 = vmatmul.mubr.bf16.gmra.mrb[0].mxu0 %v80
    %v116 = vpop.f32.mrb[0].mxu0
    %v117 = vadd.f32 0.0, %v116
    %v118 = vpop.f32.mrb[0].mxu0
    %v119 = vpop.f32.mrb[0].mxu0
    %v120 = vadd.f32 0.0, %v119
    %v121 = vpop.f32.mrb[0].mxu0
    %122 = vdwg.mxu0
    %v123 = vmax.f32 %v117, 0.0
    %v125 = vrot.slane %v117, 2
    %v127 = vmax.f32 %v123, %v125
    %v128 = vrot.slane %v117, 4
    %v130 = vmax.f32 %v127, %v128
    %v131 = vrot.slane %v117, 6
    %v133 = vmax.f32 %v130, %v131
    %v134 = vmax.f32 %v133, %v120
    %v136 = vrot.slane %v120, 2
    %v138 = vmax.f32 %v134, %v136
    %v139 = vrot.slane %v120, 4
    %v141 = vmax.f32 %v138, %v139
    %v142 = vrot.slane %v120, 6
    %v144 = vmax.f32 %v141, %v142
    %v145 = vpack.c.bf16 %v120, %v117
    %v146 = vld [vmem:[%s2] sm:$0xff]
    %v147 = vld [vmem:[%s2 + $0x8] sm:$0xff]
    %v148 = vld [vmem:[%s2 + $0x10] sm:$0xff]
    %v149 = vld [vmem:[%s2 + $0x18] sm:$0xff]
    %v150 = vld [vmem:[%s4] sm:$0xf]
    %v152 = vlaneseq
    %v153 = vshrl.u32 %v152, 7
    %v154 = vsub.s32 0, %v153
    %v155 = vrot.slane %v150, %v154
    %v156 = vlaneseq
    %v157 = vshrl.u32 %v156, 7
    %v158 = vsub.s32 1, %v157
    %v159 = vrot.slane %v150, %v158
    %v160 = vlaneseq
    %v161 = vshrl.u32 %v160, 7
    %v162 = vsub.s32 2, %v161
    %v163 = vrot.slane %v150, %v162
    %v164 = vlaneseq
    %v165 = vshrl.u32 %v164, 7
    %v166 = vsub.s32 3, %v165
    %v167 = vrot.slane %v150, %v166
    %v176 = vunpack.c.l.b16 %v146
    %v177 = vunpack.c.h.b16 %v146
    %v178 = vunpack.c.l.b16 %v147
    %v179 = vunpack.c.h.b16 %v147
    %v180 = vunpack.c.l.b16 %v148
    %v181 = vunpack.c.h.b16 %v148
    %v182 = vunpack.c.l.b16 %v149
    %v183 = vunpack.c.h.b16 %v149
    %v184 = vpack.c.b16 %v180, %v176
    %v185 = vpack.c.b16 %v181, %v177
    %v186 = vpack.c.b16 %v182, %v178
    %v187 = vpack.c.b16 %v183, %v179
    %vm192 = vcmask 130048
    %v194 = vsel %vm192, %v145, 0
    %196 = vmatprep.subr.bf16.mxu0 %v185
    %197 = vmatpush1.bf16.msra.mxu0 %v184
    %198 = vmatprep.subr.bf16.mxu0 0
    %199 = vmatpush1.bf16.msra.mxu0 0
    %200 = vmatprep.subr.bf16.mxu0 0
    %201 = vmatpush1.bf16.msra.mxu0 0
    %202 = vmatprep.subr.bf16.mxu0 0
    %203 = vmatpush1.bf16.msra.mxu0 0
    %204 = vmatprep.subr.bf16.mxu0 0
    %205 = vmatpush1.bf16.msra.mxu0 0
    %206 = vmatprep.subr.bf16.mxu0 0
    %207 = vmatpush1.bf16.msra.mxu0 0
    %208 = vmatprep.subr.bf16.mxu0 0
    %209 = vmatpush1.bf16.msra.mxu0 0
    %210 = vmatprep.subr.bf16.mxu0 0
    %211 = vmatpush1.bf16.msra.mxu0 0
    %212 = vmatprep.subr.bf16.mxu0 0
    %213 = vmatpush1.bf16.msra.mxu0 0
    %214 = vmatprep.subr.bf16.mxu0 0
    %215 = vmatpush1.bf16.msra.mxu0 0
    %216 = vmatprep.subr.bf16.mxu0 0
    %217 = vmatpush1.bf16.msra.mxu0 0
    %218 = vmatprep.subr.bf16.mxu0 0
    %219 = vmatpush1.bf16.msra.mxu0 0
    %220 = vmatprep.subr.bf16.mxu0 0
    %221 = vmatpush1.bf16.msra.mxu0 0
    %222 = vmatprep.subr.bf16.mxu0 0
    %223 = vmatpush1.bf16.msra.mxu0 0
    %224 = vmatprep.subr.bf16.mxu0 0
    %225 = vmatpush1.bf16.msra.mxu0 0
    %226 = vmatprep.subr.bf16.mxu0 0
    %227 = vmatpush1.bf16.msra.mxu0 0
    %228 = vmatprep.mubr.bf16.mxu0 0
    %229 = vmatmul.mubr.bf16.gmra.mrb[0].mxu0 %v194
    %v230 = vpop.f32.mrb[0].mxu0
    %v231 = vadd.f32 %v155, %v230
    %v232 = vpop.f32.mrb[0].mxu0
    %v233 = vadd.f32 %v159, %v232
    %v234 = vpop.f32.mrb[0].mxu0
    %v235 = vadd.f32 %v155, %v234
    %v236 = vpop.f32.mrb[0].mxu0
    %v237 = vadd.f32 %v159, %v236
    %238 = vdwg.mxu0
    %239 = vmatprep.subr.bf16.mxu0 %v187
    %240 = vmatpush1.bf16.msra.mxu0 %v186
    %241 = vmatprep.subr.bf16.mxu0 0
    %242 = vmatpush1.bf16.msra.mxu0 0
    %243 = vmatprep.subr.bf16.mxu0 0
    %244 = vmatpush1.bf16.msra.mxu0 0
    %245 = vmatprep.subr.bf16.mxu0 0
    %246 = vmatpush1.bf16.msra.mxu0 0
    %247 = vmatprep.subr.bf16.mxu0 0
    %248 = vmatpush1.bf16.msra.mxu0 0
    %249 = vmatprep.subr.bf16.mxu0 0
    %250 = vmatpush1.bf16.msra.mxu0 0
    %251 = vmatprep.subr.bf16.mxu0 0
    %252 = vmatpush1.bf16.msra.mxu0 0
    %253 = vmatprep.subr.bf16.mxu0 0
    %254 = vmatpush1.bf16.msra.mxu0 0
    %255 = vmatprep.subr.bf16.mxu0 0
    %256 = vmatpush1.bf16.msra.mxu0 0
    %257 = vmatprep.subr.bf16.mxu0 0
    %258 = vmatpush1.bf16.msra.mxu0 0
    %259 = vmatprep.subr.bf16.mxu0 0
    %260 = vmatpush1.bf16.msra.mxu0 0
    %261 = vmatprep.subr.bf16.mxu0 0
    %262 = vmatpush1.bf16.msra.mxu0 0
    %263 = vmatprep.subr.bf16.mxu0 0
    %264 = vmatpush1.bf16.msra.mxu0 0
    %265 = vmatprep.subr.bf16.mxu0 0
    %266 = vmatpush1.bf16.msra.mxu0 0
    %267 = vmatprep.subr.bf16.mxu0 0
    %268 = vmatpush1.bf16.msra.mxu0 0
    %269 = vmatprep.subr.bf16.mxu0 0
    %270 = vmatpush1.bf16.msra.mxu0 0
    %271 = vmatprep.mubr.bf16.mxu0 0
    %272 = vmatmul.mubr.bf16.gmra.mrb[0].mxu0 %v194
    %v273 = vpop.f32.mrb[0].mxu0
    %v274 = vadd.f32 %v163, %v273
    %v275 = vpop.f32.mrb[0].mxu0
    %v276 = vadd.f32 %v167, %v275
    %v277 = vpop.f32.mrb[0].mxu0
    %v278 = vadd.f32 %v163, %v277
    %v279 = vpop.f32.mrb[0].mxu0
    %v280 = vadd.f32 %v167, %v279
    %281 = vdwg.mxu0
    %v282 = vadd.s32 %v48, 128
    %v283 = vadd.s32 %v48, 256
    %v284 = vadd.s32 %v48, 384
    %vm285 = vcmp.lt.s32.totalorder %v48, 0
    %v286 = vsub.s32 0, %v48
    %v287 = vsel %vm285, %v286, %v48
    %v288 = vshrl.u32 %v287, 7
    %v289 = vand.u32 %v287, 127
    %v290 = vsub.s32 0, %v289
    %v291 = vsel %vm285, %v290, %v289
    %vm292 = vcmp.lt.s32.totalorder %v282, 0
    %v293 = vsub.s32 0, %v282
    %v294 = vsel %vm292, %v293, %v282
    %v295 = vshrl.u32 %v294, 7
    %v296 = vand.u32 %v294, 127
    %v297 = vsub.s32 0, %v296
    %v298 = vsel %vm292, %v297, %v296
    %vm299 = vcmp.lt.s32.totalorder %v283, 0
    %v300 = vsub.s32 0, %v283
    %v301 = vsel %vm299, %v300, %v283
    %v302 = vshrl.u32 %v301, 7
    %v303 = vand.u32 %v301, 127
    %v304 = vsub.s32 0, %v303
    %v305 = vsel %vm299, %v304, %v303
    %vm306 = vcmp.lt.s32.totalorder %v284, 0
    %v307 = vsub.s32 0, %v284
    %v308 = vsel %vm306, %v307, %v284
    %v309 = vshrl.u32 %v308, 7
    %v310 = vand.u32 %v308, 127
    %v311 = vsub.s32 0, %v310
    %v312 = vsel %vm306, %v311, %v310
    %vm313 = vcmp.ne.s32.totalorder %v291, 0
    %vm314 = vcmp.ne.s32.totalorder %v298, 0
    %vm315 = vcmp.ne.s32.totalorder %v305, 0
    %vm316 = vcmp.ne.s32.totalorder %v312, 0
    %vm317 = vcmp.lt.s32.totalorder %v291, 0
    %vm318 = vcmp.lt.s32.totalorder %v298, 0
    %vm319 = vcmp.lt.s32.totalorder %v305, 0
    %vm320 = vcmp.lt.s32.totalorder %v312, 0
    %vm321 = vmand %vm317, %vm313
    %vm322 = vmand %vm318, %vm314
    %vm323 = vmand %vm319, %vm315
    %vm324 = vmand %vm320, %vm316
    %v325 = vadd.s32 %v291, 128
    %v326 = vadd.s32 %v298, 128
    %v327 = vadd.s32 %v305, 128
    %v328 = vadd.s32 %v312, 128
    %v329 = vsel %vm321, %v325, %v291
    %v330 = vsel %vm322, %v326, %v298
    %v331 = vsel %vm323, %v327, %v305
    %v332 = vsel %vm324, %v328, %v312
    %vm333 = vcmp.lt.s32.totalorder %v329, 64
    %vm334 = vcmp.lt.s32.totalorder %v330, 64
    %vm335 = vcmp.lt.s32.totalorder %v331, 64
    %vm336 = vcmp.lt.s32.totalorder %v332, 64
    %v341 = vrot.slane %v235, 6
    %v342 = vrot.slane %v237, 6
    %v343 = vrot.slane %v278, 6
    %v344 = vrot.slane %v280, 6
    %v349 = vsel %vm333, %v231, %v341
    %v350 = vsel %vm334, %v233, %v342
    %v351 = vsel %vm335, %v274, %v343
    %v352 = vsel %vm336, %v276, %v344
    %v353 = vrot.slane %v235, 2
    %v354 = vrot.slane %v237, 2
    %v355 = vrot.slane %v278, 2
    %v356 = vrot.slane %v280, 2
    %v361 = vsel %vm333, %v231, %v353
    %v362 = vsel %vm334, %v233, %v354
    %v363 = vsel %vm335, %v274, %v355
    %v364 = vsel %vm336, %v276, %v356
    %v369 = vrot.slane %v231, 6
    %v370 = vrot.slane %v233, 6
    %v371 = vrot.slane %v274, 6
    %v372 = vrot.slane %v276, 6
    %v377 = vsel %vm333, %v235, %v369
    %v378 = vsel %vm334, %v237, %v370
    %v379 = vsel %vm335, %v278, %v371
    %v380 = vsel %vm336, %v280, %v372
    %v381 = vrot.slane %v231, 2
    %v382 = vrot.slane %v233, 2
    %v383 = vrot.slane %v274, 2
    %v384 = vrot.slane %v276, 2
    %v389 = vsel %vm333, %v235, %v381
    %v390 = vsel %vm334, %v237, %v382
    %v391 = vsel %vm335, %v278, %v383
    %v392 = vsel %vm336, %v280, %v384
    %v393 = vld [vmem:[#allocation2] sm:$0xff]
    %v394 = vld [vmem:[#allocation2 + $0x8] sm:$0xff]
    %v395 = vld [vmem:[#allocation2 + $0x10] sm:$0xff]
    %v396 = vld [vmem:[#allocation2 + $0x18] sm:$0xff]
    %v397 = vld [vmem:[#allocation2 + $0x20] sm:$0xff]
    %v398 = vld [vmem:[#allocation2 + $0x28] sm:$0xff]
    %v399 = vld [vmem:[#allocation2 + $0x30] sm:$0xff]
    %v400 = vld [vmem:[#allocation2 + $0x38] sm:$0xff]
    %v401 = vld [vmem:[#allocation2 + $0x40] sm:$0xff]
    %v402 = vld [vmem:[#allocation2 + $0x48] sm:$0xff]
    %v403 = vld [vmem:[#allocation2 + $0x50] sm:$0xff]
    %v404 = vld [vmem:[#allocation2 + $0x58] sm:$0xff]
    %v405 = vld [vmem:[#allocation2 + $0x60] sm:$0xff]
    %v406 = vld [vmem:[#allocation2 + $0x68] sm:$0xff]
    %v407 = vld [vmem:[#allocation2 + $0x70] sm:$0xff]
    %v408 = vld [vmem:[#allocation2 + $0x78] sm:$0xff]
    %v409 = vld [vmem:[#allocation2 + $0x80] sm:$0xff]
    %v410 = vld [vmem:[#allocation2 + $0x88] sm:$0xff]
    %v411 = vld [vmem:[#allocation2 + $0x90] sm:$0xff]
    %v412 = vld [vmem:[#allocation2 + $0x98] sm:$0xff]
    %v413 = vld [vmem:[#allocation2 + $0xa0] sm:$0xff]
    %v414 = vld [vmem:[#allocation2 + $0xa8] sm:$0xff]
    %v415 = vld [vmem:[#allocation2 + $0xb0] sm:$0xff]
    %v416 = vld [vmem:[#allocation2 + $0xb8] sm:$0xff]
    %v417 = vld [vmem:[#allocation2 + $0xc0] sm:$0xff]
    %v418 = vld [vmem:[#allocation2 + $0xc8] sm:$0xff]
    %v419 = vld [vmem:[#allocation2 + $0xd0] sm:$0xff]
    %v420 = vld [vmem:[#allocation2 + $0xd8] sm:$0xff]
    %v421 = vld [vmem:[#allocation2 + $0xe0] sm:$0xff]
    %v422 = vld [vmem:[#allocation2 + $0xe8] sm:$0xff]
    %v423 = vld [vmem:[#allocation2 + $0xf0] sm:$0xff]
    %v424 = vld [vmem:[#allocation2 + $0xf8] sm:$0xff]
    %v457 = vunpack.c.l.b16 %v393
    %v458 = vunpack.c.h.b16 %v393
    %v459 = vunpack.c.l.b16 %v394
    %v460 = vunpack.c.h.b16 %v394
    %v461 = vunpack.c.l.b16 %v395
    %v462 = vunpack.c.h.b16 %v395
    %v463 = vunpack.c.l.b16 %v396
    %v464 = vunpack.c.h.b16 %v396
    %v465 = vunpack.c.l.b16 %v397
    %v466 = vunpack.c.h.b16 %v397
    %v467 = vunpack.c.l.b16 %v398
    %v468 = vunpack.c.h.b16 %v398
    %v469 = vunpack.c.l.b16 %v399
    %v470 = vunpack.c.h.b16 %v399
    %v471 = vunpack.c.l.b16 %v400
    %v472 = vunpack.c.h.b16 %v400
    %v473 = vunpack.c.l.b16 %v401
    %v474 = vunpack.c.h.b16 %v401
    %v475 = vunpack.c.l.b16 %v402
    %v476 = vunpack.c.h.b16 %v402
    %v477 = vunpack.c.l.b16 %v403
    %v478 = vunpack.c.h.b16 %v403
    %v479 = vunpack.c.l.b16 %v404
    %v480 = vunpack.c.h.b16 %v404
    %v481 = vunpack.c.l.b16 %v405
    %v482 = vunpack.c.h.b16 %v405
    %v483 = vunpack.c.l.b16 %v406
    %v484 = vunpack.c.h.b16 %v406
    %v485 = vunpack.c.l.b16 %v407
    %v486 = vunpack.c.h.b16 %v407
    %v487 = vunpack.c.l.b16 %v408
    %v488 = vunpack.c.h.b16 %v408
    %v489 = vunpack.c.l.b16 %v409
    %v490 = vunpack.c.h.b16 %v409
    %v491 = vunpack.c.l.b16 %v410
    %v492 = vunpack.c.h.b16 %v410
    %v493 = vunpack.c.l.b16 %v411
    %v494 = vunpack.c.h.b16 %v411
    %v495 = vunpack.c.l.b16 %v412
    %v496 = vunpack.c.h.b16 %v412
    %v497 = vunpack.c.l.b16 %v413
    %v498 = vunpack.c.h.b16 %v413
    %v499 = vunpack.c.l.b16 %v414
    %v500 = vunpack.c.h.b16 %v414
    %v501 = vunpack.c.l.b16 %v415
    %v502 = vunpack.c.h.b16 %v415
    %v503 = vunpack.c.l.b16 %v416
    %v504 = vunpack.c.h.b16 %v416
    %v505 = vunpack.c.l.b16 %v417
    %v506 = vunpack.c.h.b16 %v417
    %v507 = vunpack.c.l.b16 %v418
    %v508 = vunpack.c.h.b16 %v418
    %v509 = vunpack.c.l.b16 %v419
    %v510 = vunpack.c.h.b16 %v419
    %v511 = vunpack.c.l.b16 %v420
    %v512 = vunpack.c.h.b16 %v420
    %v513 = vunpack.c.l.b16 %v421
    %v514 = vunpack.c.h.b16 %v421
    %v515 = vunpack.c.l.b16 %v422
    %v516 = vunpack.c.h.b16 %v422
    %v517 = vunpack.c.l.b16 %v423
    %v518 = vunpack.c.h.b16 %v423
    %v519 = vunpack.c.l.b16 %v424
    %v520 = vunpack.c.h.b16 %v424
    %v521 = vpack.c.b16 %v461, %v457
    %v522 = vpack.c.b16 %v462, %v458
    %v523 = vpack.c.b16 %v463, %v459
    %v524 = vpack.c.b16 %v464, %v460
    %v525 = vpack.c.b16 %v469, %v465
    %v526 = vpack.c.b16 %v470, %v466
    %v527 = vpack.c.b16 %v471, %v467
    %v528 = vpack.c.b16 %v472, %v468
    %v529 = vpack.c.b16 %v477, %v473
    %v530 = vpack.c.b16 %v478, %v474
    %v531 = vpack.c.b16 %v479, %v475
    %v532 = vpack.c.b16 %v480, %v476
    %v533 = vpack.c.b16 %v485, %v481
    %v534 = vpack.c.b16 %v486, %v482
    %v535 = vpack.c.b16 %v487, %v483
    %v536 = vpack.c.b16 %v488, %v484
    %v537 = vpack.c.b16 %v493, %v489
    %v538 = vpack.c.b16 %v494, %v490
    %v539 = vpack.c.b16 %v495, %v491
    %v540 = vpack.c.b16 %v496, %v492
    %v541 = vpack.c.b16 %v501, %v497
    %v542 = vpack.c.b16 %v502, %v498
    %v543 = vpack.c.b16 %v503, %v499
    %v544 = vpack.c.b16 %v504, %v500
    %v545 = vpack.c.b16 %v509, %v505
    %v546 = vpack.c.b16 %v510, %v506
    %v547 = vpack.c.b16 %v511, %v507
    %v548 = vpack.c.b16 %v512, %v508
    %v549 = vpack.c.b16 %v517, %v513
    %v550 = vpack.c.b16 %v518, %v514
    %v551 = vpack.c.b16 %v519, %v515
    %v552 = vpack.c.b16 %v520, %v516
    %585 = vmatprep.subr.bf16.mxu0 %v522
    %586 = vmatpush1.bf16.msra.mxu0 %v521
    %587 = vmatprep.subr.bf16.mxu0 %v526
    %588 = vmatpush1.bf16.msra.mxu0 %v525
    %589 = vmatprep.subr.bf16.mxu0 %v530
    %590 = vmatpush1.bf16.msra.mxu0 %v529
    %591 = vmatprep.subr.bf16.mxu0 %v534
    %592 = vmatpush1.bf16.msra.mxu0 %v533
    %593 = vmatprep.subr.bf16.mxu0 %v538
    %594 = vmatpush1.bf16.msra.mxu0 %v537
    %595 = vmatprep.subr.bf16.mxu0 %v542
    %596 = vmatpush1.bf16.msra.mxu0 %v541
    %597 = vmatprep.subr.bf16.mxu0 %v546
    %598 = vmatpush1.bf16.msra.mxu0 %v545
    %599 = vmatprep.subr.bf16.mxu0 %v550
    %600 = vmatpush1.bf16.msra.mxu0 %v549
    %601 = vmatprep.subr.bf16.mxu0 0
    %602 = vmatpush1.bf16.msra.mxu0 0
    %603 = vmatprep.subr.bf16.mxu0 0
    %604 = vmatpush1.bf16.msra.mxu0 0
    %605 = vmatprep.subr.bf16.mxu0 0
    %606 = vmatpush1.bf16.msra.mxu0 0
    %607 = vmatprep.subr.bf16.mxu0 0
    %608 = vmatpush1.bf16.msra.mxu0 0
    %609 = vmatprep.subr.bf16.mxu0 0
    %610 = vmatpush1.bf16.msra.mxu0 0
    %611 = vmatprep.subr.bf16.mxu0 0
    %612 = vmatpush1.bf16.msra.mxu0 0
    %613 = vmatprep.subr.bf16.mxu0 0
    %614 = vmatpush1.bf16.msra.mxu0 0
    %615 = vmatprep.subr.bf16.mxu0 0
    %616 = vmatpush1.bf16.msra.mxu0 0
    %617 = vmatprep.mubr.bf16.mxu0 0
    %618 = vmatmul.mubr.bf16.gmra.mrb[0].mxu0 0
    %v619 = vpop.f32.mrb[0].mxu0
    %v620 = vadd.f32 %v349, %v619
    %v621 = vpop.f32.mrb[0].mxu0
    %v622 = vadd.f32 %v350, %v621
    %v623 = vpop.f32.mrb[0].mxu0
    %v624 = vpop.f32.mrb[0].mxu0
    %625 = vdwg.mxu0
    %626 = vmatprep.subr.bf16.mxu0 %v524
    %627 = vmatpush1.bf16.msra.mxu0 %v523
    %628 = vmatprep.subr.bf16.mxu0 %v528
    %629 = vmatpush1.bf16.msra.mxu0 %v527
    %630 = vmatprep.subr.bf16.mxu0 %v532
    %631 = vmatpush1.bf16.msra.mxu0 %v531
    %632 = vmatprep.subr.bf16.mxu0 %v536
    %633 = vmatpush1.bf16.msra.mxu0 %v535
    %634 = vmatprep.subr.bf16.mxu0 %v540
    %635 = vmatpush1.bf16.msra.mxu0 %v539
    %636 = vmatprep.subr.bf16.mxu0 %v544
    %637 = vmatpush1.bf16.msra.mxu0 %v543
    %638 = vmatprep.subr.bf16.mxu0 %v548
    %639 = vmatpush1.bf16.msra.mxu0 %v547
    %640 = vmatprep.subr.bf16.mxu0 %v552
    %641 = vmatpush1.bf16.msra.mxu0 %v551
    %642 = vmatprep.subr.bf16.mxu0 0
    %643 = vmatpush1.bf16.msra.mxu0 0
    %644 = vmatprep.subr.bf16.mxu0 0
    %645 = vmatpush1.bf16.msra.mxu0 0
    %646 = vmatprep.subr.bf16.mxu0 0
    %647 = vmatpush1.bf16.msra.mxu0 0
    %648 = vmatprep.subr.bf16.mxu0 0
    %649 = vmatpush1.bf16.msra.mxu0 0
    %650 = vmatprep.subr.bf16.mxu0 0
    %651 = vmatpush1.bf16.msra.mxu0 0
    %652 = vmatprep.subr.bf16.mxu0 0
    %653 = vmatpush1.bf16.msra.mxu0 0
    %654 = vmatprep.subr.bf16.mxu0 0
    %655 = vmatpush1.bf16.msra.mxu0 0
    %656 = vmatprep.subr.bf16.mxu0 0
    %657 = vmatpush1.bf16.msra.mxu0 0
    %658 = vmatprep.mubr.bf16.mxu0 0
    %659 = vmatmul.mubr.bf16.gmra.mrb[0].mxu0 0
    %v660 = vpop.f32.mrb[0].mxu0
    %v661 = vadd.f32 %v351, %v660
    %v662 = vpop.f32.mrb[0].mxu0
    %v663 = vadd.f32 %v352, %v662
    %v664 = vpop.f32.mrb[0].mxu0
    %v665 = vpop.f32.mrb[0].mxu0
    %666 = vdwg.mxu0
    %v667 = vxor.u32 %v620, 2147483648
    %v668 = vmul.f32 %v667, 1.442695
    %v669 = vpow.pop %v668
    %v670 = vadd.f32 %v669, 1.0
    %v671 = vrcp.pop %v670
    %v672 = vmul.f32 1.0, %v671
    %v673 = vxor.u32 %v622, 2147483648
    %v674 = vmul.f32 %v673, 1.442695
    %v675 = vpow.pop %v674
    %v676 = vadd.f32 %v675, 1.0
    %v677 = vrcp.pop %v676
    %v678 = vmul.f32 1.0, %v677
    %v679 = vtanh.pop %v661
    %v680 = vxor.u32 %v663, 2147483648
    %v681 = vmul.f32 %v680, 1.442695
    %v682 = vpow.pop %v681
    %v683 = vadd.f32 %v682, 1.0
    %v684 = vrcp.pop %v683
    %v685 = vmul.f32 1.0, %v684
    %v686 = vmul.f32 %v678, 0.0
    %v687 = vmul.f32 %v672, %v679
    %v688 = vadd.f32 %v686, %v687
    %v689 = vtanh.pop %v688
    %v690 = vmul.f32 %v685, %v689
    %v691 = vmax.f32 %v690, 0.0
    %v692 = vpack.c.bf16 %v690, %v690
    %v697 = vrot.slane %v361, 2
    %v698 = vrot.slane %v362, 2
    %v699 = vrot.slane %v363, 2
    %v700 = vrot.slane %v364, 2
    %705 = vmatprep.subr.bf16.mxu0 %v522
    %706 = vmatpush1.bf16.msra.mxu0 %v521
    %707 = vmatprep.subr.bf16.mxu0 %v526
    %708 = vmatpush1.bf16.msra.mxu0 %v525
    %709 = vmatprep.subr.bf16.mxu0 %v530
    %710 = vmatpush1.bf16.msra.mxu0 %v529
    %711 = vmatprep.subr.bf16.mxu0 %v534
    %712 = vmatpush1.bf16.msra.mxu0 %v533
    %713 = vmatprep.subr.bf16.mxu0 %v538
    %714 = vmatpush1.bf16.msra.mxu0 %v537
    %715 = vmatprep.subr.bf16.mxu0 %v542
    %716 = vmatpush1.bf16.msra.mxu0 %v541
    %717 = vmatprep.subr.bf16.mxu0 %v546
    %718 = vmatpush1.bf16.msra.mxu0 %v545
    %719 = vmatprep.subr.bf16.mxu0 %v550
    %720 = vmatpush1.bf16.msra.mxu0 %v549
    %721 = vmatprep.subr.bf16.mxu0 0
    %722 = vmatpush1.bf16.msra.mxu0 0
    %723 = vmatprep.subr.bf16.mxu0 0
    %724 = vmatpush1.bf16.msra.mxu0 0
    %725 = vmatprep.subr.bf16.mxu0 0
    %726 = vmatpush1.bf16.msra.mxu0 0
    %727 = vmatprep.subr.bf16.mxu0 0
    %728 = vmatpush1.bf16.msra.mxu0 0
    %729 = vmatprep.subr.bf16.mxu0 0
    %730 = vmatpush1.bf16.msra.mxu0 0
    %731 = vmatprep.subr.bf16.mxu0 0
    %732 = vmatpush1.bf16.msra.mxu0 0
    %733 = vmatprep.subr.bf16.mxu0 0
    %734 = vmatpush1.bf16.msra.mxu0 0
    %735 = vmatprep.subr.bf16.mxu0 0
    %736 = vmatpush1.bf16.msra.mxu0 0
    %737 = vmatprep.mubr.bf16.mxu0 0
    %738 = vmatmul.mubr.bf16.gmra.mrb[0].mxu0 %v692
    %v739 = vpop.f32.mrb[0].mxu0
    %v740 = vadd.f32 %v697, %v739
    %v741 = vpop.f32.mrb[0].mxu0
    %v742 = vadd.f32 %v698, %v741
    %v743 = vpop.f32.mrb[0].mxu0
    %v744 = vpop.f32.mrb[0].mxu0
    %745 = vdwg.mxu0
    %746 = vmatprep.subr.bf16.mxu0 %v524
    %747 = vmatpush1.bf16.msra.mxu0 %v523
    %748 = vmatprep.subr.bf16.mxu0 %v528
    %749 = vmatpush1.bf16.msra.mxu0 %v527
    %750 = vmatprep.subr.bf16.mxu0 %v532
    %751 = vmatpush1.bf16.msra.mxu0 %v531
    %752 = vmatprep.subr.bf16.mxu0 %v536
    %753 = vmatpush1.bf16.msra.mxu0 %v535
    %754 = vmatprep.subr.bf16.mxu0 %v540
    %755 = vmatpush1.bf16.msra.mxu0 %v539
    %756 = vmatprep.subr.bf16.mxu0 %v544
    %757 = vmatpush1.bf16.msra.mxu0 %v543
    %758 = vmatprep.subr.bf16.mxu0 %v548
    %759 = vmatpush1.bf16.msra.mxu0 %v547
    %760 = vmatprep.subr.bf16.mxu0 %v552
    %761 = vmatpush1.bf16.msra.mxu0 %v551
    %762 = vmatprep.subr.bf16.mxu0 0
    %763 = vmatpush1.bf16.msra.mxu0 0
    %764 = vmatprep.subr.bf16.mxu0 0
    %765 = vmatpush1.bf16.msra.mxu0 0
    %766 = vmatprep.subr.bf16.mxu0 0
    %767 = vmatpush1.bf16.msra.mxu0 0
    %768 = vmatprep.subr.bf16.mxu0 0
    %769 = vmatpush1.bf16.msra.mxu0 0
    %770 = vmatprep.subr.bf16.mxu0 0
    %771 = vmatpush1.bf16.msra.mxu0 0
    %772 = vmatprep.subr.bf16.mxu0 0
    %773 = vmatpush1.bf16.msra.mxu0 0
    %774 = vmatprep.subr.bf16.mxu0 0
    %775 = vmatpush1.bf16.msra.mxu0 0
    %776 = vmatprep.subr.bf16.mxu0 0
    %777 = vmatpush1.bf16.msra.mxu0 0
    %778 = vmatprep.mubr.bf16.mxu0 0
    %779 = vmatmul.mubr.bf16.gmra.mrb[0].mxu0 %v692
    %v780 = vpop.f32.mrb[0].mxu0
    %v781 = vadd.f32 %v699, %v780
    %v782 = vpop.f32.mrb[0].mxu0
    %v783 = vadd.f32 %v700, %v782
    %v784 = vpop.f32.mrb[0].mxu0
    %v785 = vpop.f32.mrb[0].mxu0
    %786 = vdwg.mxu0
    %v787 = vxor.u32 %v740, 2147483648
    %v788 = vmul.f32 %v787, 1.442695
    %v789 = vpow.pop %v788
    %v790 = vadd.f32 %v789, 1.0
    %v791 = vrcp.pop %v790
    %v792 = vmul.f32 1.0, %v791
    %v793 = vxor.u32 %v742, 2147483648
    %v794 = vmul.f32 %v793, 1.442695
    %v795 = vpow.pop %v794
    %v796 = vadd.f32 %v795, 1.0
    %v797 = vrcp.pop %v796
    %v798 = vmul.f32 1.0, %v797
    %v799 = vtanh.pop %v781
    %v800 = vxor.u32 %v783, 2147483648
    %v801 = vmul.f32 %v800, 1.442695
    %v802 = vpow.pop %v801
    %v803 = vadd.f32 %v802, 1.0
    %v804 = vrcp.pop %v803
    %v805 = vmul.f32 1.0, %v804
    %v806 = vmul.f32 %v798, %v688
    %v807 = vmul.f32 %v792, %v799
    %v808 = vadd.f32 %v806, %v807
    %v809 = vtanh.pop %v808
    %v810 = vmul.f32 %v805, %v809
    %v811 = vmax.f32 %v691, %v810
    %v812 = vpack.c.bf16 %v810, %v810
    %v817 = vrot.slane %v349, 4
    %v818 = vrot.slane %v350, 4
    %v819 = vrot.slane %v351, 4
    %v820 = vrot.slane %v352, 4
    %825 = vmatprep.subr.bf16.mxu0 %v522
    %826 = vmatpush1.bf16.msra.mxu0 %v521
    %827 = vmatprep.subr.bf16.mxu0 %v526
    %828 = vmatpush1.bf16.msra.mxu0 %v525
    %829 = vmatprep.subr.bf16.mxu0 %v530
    %830 = vmatpush1.bf16.msra.mxu0 %v529
    %831 = vmatprep.subr.bf16.mxu0 %v534
    %832 = vmatpush1.bf16.msra.mxu0 %v533
    %833 = vmatprep.subr.bf16.mxu0 %v538
    %834 = vmatpush1.bf16.msra.mxu0 %v537
    %835 = vmatprep.subr.bf16.mxu0 %v542
    %836 = vmatpush1.bf16.msra.mxu0 %v541
    %837 = vmatprep.subr.bf16.mxu0 %v546
    %838 = vmatpush1.bf16.msra.mxu0 %v545
    %839 = vmatprep.subr.bf16.mxu0 %v550
    %840 = vmatpush1.bf16.msra.mxu0 %v549
    %841 = vmatprep.subr.bf16.mxu0 0
    %842 = vmatpush1.bf16.msra.mxu0 0
    %843 = vmatprep.subr.bf16.mxu0 0
    %844 = vmatpush1.bf16.msra.mxu0 0
    %845 = vmatprep.subr.bf16.mxu0 0
    %846 = vmatpush1.bf16.msra.mxu0 0
    %847 = vmatprep.subr.bf16.mxu0 0
    %848 = vmatpush1.bf16.msra.mxu0 0
    %849 = vmatprep.subr.bf16.mxu0 0
    %850 = vmatpush1.bf16.msra.mxu0 0
    %851 = vmatprep.subr.bf16.mxu0 0
    %852 = vmatpush1.bf16.msra.mxu0 0
    %853 = vmatprep.subr.bf16.mxu0 0
    %854 = vmatpush1.bf16.msra.mxu0 0
    %855 = vmatprep.subr.bf16.mxu0 0
    %856 = vmatpush1.bf16.msra.mxu0 0
    %857 = vmatprep.mubr.bf16.mxu0 0
    %858 = vmatmul.mubr.bf16.gmra.mrb[0].mxu0 %v812
    %v859 = vpop.f32.mrb[0].mxu0
    %v860 = vadd.f32 %v817, %v859
    %v861 = vpop.f32.mrb[0].mxu0
    %v862 = vadd.f32 %v818, %v861
    %v863 = vpop.f32.mrb[0].mxu0
    %v864 = vpop.f32.mrb[0].mxu0
    %865 = vdwg.mxu0
    %866 = vmatprep.subr.bf16.mxu0 %v524
    %867 = vmatpush1.bf16.msra.mxu0 %v523
    %868 = vmatprep.subr.bf16.mxu0 %v528
    %869 = vmatpush1.bf16.msra.mxu0 %v527
    %870 = vmatprep.subr.bf16.mxu0 %v532
    %871 = vmatpush1.bf16.msra.mxu0 %v531
    %872 = vmatprep.subr.bf16.mxu0 %v536
    %873 = vmatpush1.bf16.msra.mxu0 %v535
    %874 = vmatprep.subr.bf16.mxu0 %v540
    %875 = vmatpush1.bf16.msra.mxu0 %v539
    %876 = vmatprep.subr.bf16.mxu0 %v544
    %877 = vmatpush1.bf16.msra.mxu0 %v543
    %878 = vmatprep.subr.bf16.mxu0 %v548
    %879 = vmatpush1.bf16.msra.mxu0 %v547
    %880 = vmatprep.subr.bf16.mxu0 %v552
    %881 = vmatpush1.bf16.msra.mxu0 %v551
    %882 = vmatprep.subr.bf16.mxu0 0
    %883 = vmatpush1.bf16.msra.mxu0 0
    %884 = vmatprep.subr.bf16.mxu0 0
    %885 = vmatpush1.bf16.msra.mxu0 0
    %886 = vmatprep.subr.bf16.mxu0 0
    %887 = vmatpush1.bf16.msra.mxu0 0
    %888 = vmatprep.subr.bf16.mxu0 0
    %889 = vmatpush1.bf16.msra.mxu0 0
    %890 = vmatprep.subr.bf16.mxu0 0
    %891 = vmatpush1.bf16.msra.mxu0 0
    %892 = vmatprep.subr.bf16.mxu0 0
    %893 = vmatpush1.bf16.msra.mxu0 0
    %894 = vmatprep.subr.bf16.mxu0 0
    %895 = vmatpush1.bf16.msra.mxu0 0
    %896 = vmatprep.subr.bf16.mxu0 0
    %897 = vmatpush1.bf16.msra.mxu0 0
    %898 = vmatprep.mubr.bf16.mxu0 0
    %899 = vmatmul.mubr.bf16.gmra.mrb[0].mxu0 %v812
    %v900 = vpop.f32.mrb[0].mxu0
    %v901 = vadd.f32 %v819, %v900
    %v902 = vpop.f32.mrb[0].mxu0
    %v903 = vadd.f32 %v820, %v902
    %v904 = vpop.f32.mrb[0].mxu0
    %v905 = vpop.f32.mrb[0].mxu0
    %906 = vdwg.mxu0
    %v907 = vxor.u32 %v860, 2147483648
    %v908 = vmul.f32 %v907, 1.442695
    %v909 = vpow.pop %v908
    %v910 = vadd.f32 %v909, 1.0
    %v911 = vrcp.pop %v910
    %v912 = vmul.f32 1.0, %v911
    %v913 = vxor.u32 %v862, 2147483648
    %v914 = vmul.f32 %v913, 1.442695
    %v915 = vpow.pop %v914
    %v916 = vadd.f32 %v915, 1.0
    %v917 = vrcp.pop %v916
    %v918 = vmul.f32 1.0, %v917
    %v919 = vtanh.pop %v901
    %v920 = vxor.u32 %v903, 2147483648
    %v921 = vmul.f32 %v920, 1.442695
    %v922 = vpow.pop %v921
    %v923 = vadd.f32 %v922, 1.0
    %v924 = vrcp.pop %v923
    %v925 = vmul.f32 1.0, %v924
    %v926 = vmul.f32 %v918, %v808
    %v927 = vmul.f32 %v912, %v919
    %v928 = vadd.f32 %v926, %v927
    %v929 = vtanh.pop %v928
    %v930 = vmul.f32 %v925, %v929
    %v931 = vmax.f32 %v811, %v930
    %v932 = vpack.c.bf16 %v930, %v930
    %v933 = vrot.slane %v361, 6
    %v934 = vrot.slane %v362, 6
    %v935 = vrot.slane %v363, 6
    %v936 = vrot.slane %v364, 6
    %941 = vmatprep.subr.bf16.mxu0 %v522
    %942 = vmatpush1.bf16.msra.mxu0 %v521
    %943 = vmatprep.subr.bf16.mxu0 %v526
    %944 = vmatpush1.bf16.msra.mxu0 %v525
    %945 = vmatprep.subr.bf16.mxu0 %v530
    %946 = vmatpush1.bf16.msra.mxu0 %v529
    %947 = vmatprep.subr.bf16.mxu0 %v534
    %948 = vmatpush1.bf16.msra.mxu0 %v533
    %949 = vmatprep.subr.bf16.mxu0 %v538
    %950 = vmatpush1.bf16.msra.mxu0 %v537
    %951 = vmatprep.subr.bf16.mxu0 %v542
    %952 = vmatpush1.bf16.msra.mxu0 %v541
    %953 = vmatprep.subr.bf16.mxu0 %v546
    %954 = vmatpush1.bf16.msra.mxu0 %v545
    %955 = vmatprep.subr.bf16.mxu0 %v550
    %956 = vmatpush1.bf16.msra.mxu0 %v549
    %957 = vmatprep.subr.bf16.mxu0 0
    %958 = vmatpush1.bf16.msra.mxu0 0
    %959 = vmatprep.subr.bf16.mxu0 0
    %960 = vmatpush1.bf16.msra.mxu0 0
    %961 = vmatprep.subr.bf16.mxu0 0
    %962 = vmatpush1.bf16.msra.mxu0 0
    %963 = vmatprep.subr.bf16.mxu0 0
    %964 = vmatpush1.bf16.msra.mxu0 0
    %965 = vmatprep.subr.bf16.mxu0 0
    %966 = vmatpush1.bf16.msra.mxu0 0
    %967 = vmatprep.subr.bf16.mxu0 0
    %968 = vmatpush1.bf16.msra.mxu0 0
    %969 = vmatprep.subr.bf16.mxu0 0
    %970 = vmatpush1.bf16.msra.mxu0 0
    %971 = vmatprep.subr.bf16.mxu0 0
    %972 = vmatpush1.bf16.msra.mxu0 0
    %973 = vmatprep.mubr.bf16.mxu0 0
    %974 = vmatmul.mubr.bf16.gmra.mrb[0].mxu0 %v932
    %v975 = vpop.f32.mrb[0].mxu0
    %v976 = vadd.f32 %v933, %v975
    %v977 = vpop.f32.mrb[0].mxu0
    %v978 = vadd.f32 %v934, %v977
    %v979 = vpop.f32.mrb[0].mxu0
    %v980 = vpop.f32.mrb[0].mxu0
    %981 = vdwg.mxu0
    %982 = vmatprep.subr.bf16.mxu0 %v524
    %983 = vmatpush1.bf16.msra.mxu0 %v523
    %984 = vmatprep.subr.bf16.mxu0 %v528
    %985 = vmatpush1.bf16.msra.mxu0 %v527
    %986 = vmatprep.subr.bf16.mxu0 %v532
    %987 = vmatpush1.bf16.msra.mxu0 %v531
    %988 = vmatprep.subr.bf16.mxu0 %v536
    %989 = vmatpush1.bf16.msra.mxu0 %v535
    %990 = vmatprep.subr.bf16.mxu0 %v540
    %991 = vmatpush1.bf16.msra.mxu0 %v539
    %992 = vmatprep.subr.bf16.mxu0 %v544
    %993 = vmatpush1.bf16.msra.mxu0 %v543
    %994 = vmatprep.subr.bf16.mxu0 %v548
    %995 = vmatpush1.bf16.msra.mxu0 %v547
    %996 = vmatprep.subr.bf16.mxu0 %v552
    %997 = vmatpush1.bf16.msra.mxu0 %v551
    %998 = vmatprep.subr.bf16.mxu0 0
    %999 = vmatpush1.bf16.msra.mxu0 0
    %1000 = vmatprep.subr.bf16.mxu0 0
    %1001 = vmatpush1.bf16.msra.mxu0 0
    %1002 = vmatprep.subr.bf16.mxu0 0
    %1003 = vmatpush1.bf16.msra.mxu0 0
    %1004 = vmatprep.subr.bf16.mxu0 0
    %1005 = vmatpush1.bf16.msra.mxu0 0
    %1006 = vmatprep.subr.bf16.mxu0 0
    %1007 = vmatpush1.bf16.msra.mxu0 0
    %1008 = vmatprep.subr.bf16.mxu0 0
    %1009 = vmatpush1.bf16.msra.mxu0 0
    %1010 = vmatprep.subr.bf16.mxu0 0
    %1011 = vmatpush1.bf16.msra.mxu0 0
    %1012 = vmatprep.subr.bf16.mxu0 0
    %1013 = vmatpush1.bf16.msra.mxu0 0
    %1014 = vmatprep.mubr.bf16.mxu0 0
    %1015 = vmatmul.mubr.bf16.gmra.mrb[0].mxu0 %v932
    %v1016 = vpop.f32.mrb[0].mxu0
    %v1017 = vadd.f32 %v935, %v1016
    %v1018 = vpop.f32.mrb[0].mxu0
    %v1019 = vadd.f32 %v936, %v1018
    %v1020 = vpop.f32.mrb[0].mxu0
    %v1021 = vpop.f32.mrb[0].mxu0
    %1022 = vdwg.mxu0
    %v1023 = vxor.u32 %v976, 2147483648
    %v1024 = vmul.f32 %v1023, 1.442695
    %v1025 = vpow.pop %v1024
    %v1026 = vadd.f32 %v1025, 1.0
    %v1027 = vrcp.pop %v1026
    %v1028 = vmul.f32 1.0, %v1027
    %v1029 = vxor.u32 %v978, 2147483648
    %v1030 = vmul.f32 %v1029, 1.442695
    %v1031 = vpow.pop %v1030
    %v1032 = vadd.f32 %v1031, 1.0
    %v1033 = vrcp.pop %v1032
    %v1034 = vmul.f32 1.0, %v1033
    %v1035 = vtanh.pop %v1017
    %v1036 = vxor.u32 %v1019, 2147483648
    %v1037 = vmul.f32 %v1036, 1.442695
    %v1038 = vpow.pop %v1037
    %v1039 = vadd.f32 %v1038, 1.0
    %v1040 = vrcp.pop %v1039
    %v1041 = vmul.f32 1.0, %v1040
    %v1042 = vmul.f32 %v1034, %v928
    %v1043 = vmul.f32 %v1028, %v1035
    %v1044 = vadd.f32 %v1042, %v1043
    %v1045 = vtanh.pop %v1044
    %v1046 = vmul.f32 %v1041, %v1045
    %v1047 = vmax.f32 %v931, %v1046
    %v1048 = vpack.c.bf16 %v1046, %v1046
    %1049 = vmatprep.subr.bf16.mxu0 %v522
    %1050 = vmatpush1.bf16.msra.mxu0 %v521
    %1051 = vmatprep.subr.bf16.mxu0 %v526
    %1052 = vmatpush1.bf16.msra.mxu0 %v525
    %1053 = vmatprep.subr.bf16.mxu0 %v530
    %1054 = vmatpush1.bf16.msra.mxu0 %v529
    %1055 = vmatprep.subr.bf16.mxu0 %v534
    %1056 = vmatpush1.bf16.msra.mxu0 %v533
    %1057 = vmatprep.subr.bf16.mxu0 %v538
    %1058 = vmatpush1.bf16.msra.mxu0 %v537
    %1059 = vmatprep.subr.bf16.mxu0 %v542
    %1060 = vmatpush1.bf16.msra.mxu0 %v541
    %1061 = vmatprep.subr.bf16.mxu0 %v546
    %1062 = vmatpush1.bf16.msra.mxu0 %v545
    %1063 = vmatprep.subr.bf16.mxu0 %v550
    %1064 = vmatpush1.bf16.msra.mxu0 %v549
    %1065 = vmatprep.subr.bf16.mxu0 0
    %1066 = vmatpush1.bf16.msra.mxu0 0
    %1067 = vmatprep.subr.bf16.mxu0 0
    %1068 = vmatpush1.bf16.msra.mxu0 0
    %1069 = vmatprep.subr.bf16.mxu0 0
    %1070 = vmatpush1.bf16.msra.mxu0 0
    %1071 = vmatprep.subr.bf16.mxu0 0
    %1072 = vmatpush1.bf16.msra.mxu0 0
    %1073 = vmatprep.subr.bf16.mxu0 0
    %1074 = vmatpush1.bf16.msra.mxu0 0
    %1075 = vmatprep.subr.bf16.mxu0 0
    %1076 = vmatpush1.bf16.msra.mxu0 0
    %1077 = vmatprep.subr.bf16.mxu0 0
    %1078 = vmatpush1.bf16.msra.mxu0 0
    %1079 = vmatprep.subr.bf16.mxu0 0
    %1080 = vmatpush1.bf16.msra.mxu0 0
    %1081 = vmatprep.mubr.bf16.mxu0 0
    %1082 = vmatmul.mubr.bf16.gmra.mrb[0].mxu0 %v1048
    %v1083 = vpop.f32.mrb[0].mxu0
    %v1084 = vadd.f32 %v377, %v1083
    %v1085 = vpop.f32.mrb[0].mxu0
    %v1086 = vadd.f32 %v378, %v1085
    %v1087 = vpop.f32.mrb[0].mxu0
    %v1088 = vpop.f32.mrb[0].mxu0
    %1089 = vdwg.mxu0
    %1090 = vmatprep.subr.bf16.mxu0 %v524
    %1091 = vmatpush1.bf16.msra.mxu0 %v523
    %1092 = vmatprep.subr.bf16.mxu0 %v528
    %1093 = vmatpush1.bf16.msra.mxu0 %v527
    %1094 = vmatprep.subr.bf16.mxu0 %v532
    %1095 = vmatpush1.bf16.msra.mxu0 %v531
    %1096 = vmatprep.subr.bf16.mxu0 %v536
    %1097 = vmatpush1.bf16.msra.mxu0 %v535
    %1098 = vmatprep.subr.bf16.mxu0 %v540
    %1099 = vmatpush1.bf16.msra.mxu0 %v539
    %1100 = vmatprep.subr.bf16.mxu0 %v544
    %1101 = vmatpush1.bf16.msra.mxu0 %v543
    %1102 = vmatprep.subr.bf16.mxu0 %v548
    %1103 = vmatpush1.bf16.msra.mxu0 %v547
    %1104 = vmatprep.subr.bf16.mxu0 %v552
    %1105 = vmatpush1.bf16.msra.mxu0 %v551
    %1106 = vmatprep.subr.bf16.mxu0 0
    %1107 = vmatpush1.bf16.msra.mxu0 0
    %1108 = vmatprep.subr.bf16.mxu0 0
    %1109 = vmatpush1.bf16.msra.mxu0 0
    %1110 = vmatprep.subr.bf16.mxu0 0
    %1111 = vmatpush1.bf16.msra.mxu0 0
    %1112 = vmatprep.subr.bf16.mxu0 0
    %1113 = vmatpush1.bf16.msra.mxu0 0
    %1114 = vmatprep.subr.bf16.mxu0 0
    %1115 = vmatpush1.bf16.msra.mxu0 0
    %1116 = vmatprep.subr.bf16.mxu0 0
    %1117 = vmatpush1.bf16.msra.mxu0 0
    %1118 = vmatprep.subr.bf16.mxu0 0
    %1119 = vmatpush1.bf16.msra.mxu0 0
    %1120 = vmatprep.subr.bf16.mxu0 0
    %1121 = vmatpush1.bf16.msra.mxu0 0
    %1122 = vmatprep.mubr.bf16.mxu0 0
    %1123 = vmatmul.mubr.bf16.gmra.mrb[0].mxu0 %v1048
    %v1124 = vpop.f32.mrb[0].mxu0
    %v1125 = vadd.f32 %v379, %v1124
    %v1126 = vpop.f32.mrb[0].mxu0
    %v1127 = vadd.f32 %v380, %v1126
    %v1128 = vpop.f32.mrb[0].mxu0
    %v1129 = vpop.f32.mrb[0].mxu0
    %1130 = vdwg.mxu0
    %v1131 = vxor.u32 %v1084, 2147483648
    %v1132 = vmul.f32 %v1131, 1.442695
    %v1133 = vpow.pop %v1132
    %v1134 = vadd.f32 %v1133, 1.0
    %v1135 = vrcp.pop %v1134
    %v1136 = vmul.f32 1.0, %v1135
    %v1137 = vxor.u32 %v1086, 2147483648
    %v1138 = vmul.f32 %v1137, 1.442695
    %v1139 = vpow.pop %v1138
    %v1140 = vadd.f32 %v1139, 1.0
    %v1141 = vrcp.pop %v1140
    %v1142 = vmul.f32 1.0, %v1141
    %v1143 = vtanh.pop %v1125
    %v1144 = vxor.u32 %v1127, 2147483648
    %v1145 = vmul.f32 %v1144, 1.442695
    %v1146 = vpow.pop %v1145
    %v1147 = vadd.f32 %v1146, 1.0
    %v1148 = vrcp.pop %v1147
    %v1149 = vmul.f32 1.0, %v1148
    %v1150 = vmul.f32 %v1142, %v1044
    %v1151 = vmul.f32 %v1136, %v1143
    %v1152 = vadd.f32 %v1150, %v1151
    %v1153 = vtanh.pop %v1152
    %v1154 = vmul.f32 %v1149, %v1153
    %v1155 = vmax.f32 %v1047, %v1154
    %v1156 = vpack.c.bf16 %v1154, %v1154
    %v1161 = vrot.slane %v389, 2
    %v1162 = vrot.slane %v390, 2
    %v1163 = vrot.slane %v391, 2
    %v1164 = vrot.slane %v392, 2
    %1169 = vmatprep.subr.bf16.mxu0 %v522
    %1170 = vmatpush1.bf16.msra.mxu0 %v521
    %1171 = vmatprep.subr.bf16.mxu0 %v526
    %1172 = vmatpush1.bf16.msra.mxu0 %v525
    %1173 = vmatprep.subr.bf16.mxu0 %v530
    %1174 = vmatpush1.bf16.msra.mxu0 %v529
    %1175 = vmatprep.subr.bf16.mxu0 %v534
    %1176 = vmatpush1.bf16.msra.mxu0 %v533
    %1177 = vmatprep.subr.bf16.mxu0 %v538
    %1178 = vmatpush1.bf16.msra.mxu0 %v537
    %1179 = vmatprep.subr.bf16.mxu0 %v542
    %1180 = vmatpush1.bf16.msra.mxu0 %v541
    %1181 = vmatprep.subr.bf16.mxu0 %v546
    %1182 = vmatpush1.bf16.msra.mxu0 %v545
    %1183 = vmatprep.subr.bf16.mxu0 %v550
    %1184 = vmatpush1.bf16.msra.mxu0 %v549
    %1185 = vmatprep.subr.bf16.mxu0 0
    %1186 = vmatpush1.bf16.msra.mxu0 0
    %1187 = vmatprep.subr.bf16.mxu0 0
    %1188 = vmatpush1.bf16.msra.mxu0 0
    %1189 = vmatprep.subr.bf16.mxu0 0
    %1190 = vmatpush1.bf16.msra.mxu0 0
    %1191 = vmatprep.subr.bf16.mxu0 0
    %1192 = vmatpush1.bf16.msra.mxu0 0
    %1193 = vmatprep.subr.bf16.mxu0 0
    %1194 = vmatpush1.bf16.msra.mxu0 0
    %1195 = vmatprep.subr.bf16.mxu0 0
    %1196 = vmatpush1.bf16.msra.mxu0 0
    %1197 = vmatprep.subr.bf16.mxu0 0
    %1198 = vmatpush1.bf16.msra.mxu0 0
    %1199 = vmatprep.subr.bf16.mxu0 0
    %1200 = vmatpush1.bf16.msra.mxu0 0
    %1201 = vmatprep.mubr.bf16.mxu0 0
    %1202 = vmatmul.mubr.bf16.gmra.mrb[0].mxu0 %v1156
    %v1203 = vpop.f32.mrb[0].mxu0
    %v1204 = vadd.f32 %v1161, %v1203
    %v1205 = vpop.f32.mrb[0].mxu0
    %v1206 = vadd.f32 %v1162, %v1205
    %v1207 = vpop.f32.mrb[0].mxu0
    %v1208 = vpop.f32.mrb[0].mxu0
    %1209 = vdwg.mxu0
    %1210 = vmatprep.subr.bf16.mxu0 %v524
    %1211 = vmatpush1.bf16.msra.mxu0 %v523
    %1212 = vmatprep.subr.bf16.mxu0 %v528
    %1213 = vmatpush1.bf16.msra.mxu0 %v527
    %1214 = vmatprep.subr.bf16.mxu0 %v532
    %1215 = vmatpush1.bf16.msra.mxu0 %v531
    %1216 = vmatprep.subr.bf16.mxu0 %v536
    %1217 = vmatpush1.bf16.msra.mxu0 %v535
    %1218 = vmatprep.subr.bf16.mxu0 %v540
    %1219 = vmatpush1.bf16.msra.mxu0 %v539
    %1220 = vmatprep.subr.bf16.mxu0 %v544
    %1221 = vmatpush1.bf16.msra.mxu0 %v543
    %1222 = vmatprep.subr.bf16.mxu0 %v548
    %1223 = vmatpush1.bf16.msra.mxu0 %v547
    %1224 = vmatprep.subr.bf16.mxu0 %v552
    %1225 = vmatpush1.bf16.msra.mxu0 %v551
    %1226 = vmatprep.subr.bf16.mxu0 0
    %1227 = vmatpush1.bf16.msra.mxu0 0
    %1228 = vmatprep.subr.bf16.mxu0 0
    %1229 = vmatpush1.bf16.msra.mxu0 0
    %1230 = vmatprep.subr.bf16.mxu0 0
    %1231 = vmatpush1.bf16.msra.mxu0 0
    %1232 = vmatprep.subr.bf16.mxu0 0
    %1233 = vmatpush1.bf16.msra.mxu0 0
    %1234 = vmatprep.subr.bf16.mxu0 0
    %1235 = vmatpush1.bf16.msra.mxu0 0
    %1236 = vmatprep.subr.bf16.mxu0 0
    %1237 = vmatpush1.bf16.msra.mxu0 0
    %1238 = vmatprep.subr.bf16.mxu0 0
    %1239 = vmatpush1.bf16.msra.mxu0 0
    %1240 = vmatprep.subr.bf16.mxu0 0
    %1241 = vmatpush1.bf16.msra.mxu0 0
    %1242 = vmatprep.mubr.bf16.mxu0 0
    %1243 = vmatmul.mubr.bf16.gmra.mrb[0].mxu0 %v1156
    %v1244 = vpop.f32.mrb[0].mxu0
    %v1245 = vadd.f32 %v1163, %v1244
    %v1246 = vpop.f32.mrb[0].mxu0
    %v1247 = vadd.f32 %v1164, %v1246
    %v1248 = vpop.f32.mrb[0].mxu0
    %v1249 = vpop.f32.mrb[0].mxu0
    %1250 = vdwg.mxu0
    %v1251 = vxor.u32 %v1204, 2147483648
    %v1252 = vmul.f32 %v1251, 1.442695
    %v1253 = vpow.pop %v1252
    %v1254 = vadd.f32 %v1253, 1.0
    %v1255 = vrcp.pop %v1254
    %v1256 = vmul.f32 1.0, %v1255
    %v1257 = vxor.u32 %v1206, 2147483648
    %v1258 = vmul.f32 %v1257, 1.442695
    %v1259 = vpow.pop %v1258
    %v1260 = vadd.f32 %v1259, 1.0
    %v1261 = vrcp.pop %v1260
    %v1262 = vmul.f32 1.0, %v1261
    %v1263 = vtanh.pop %v1245
    %v1264 = vxor.u32 %v1247, 2147483648
    %v1265 = vmul.f32 %v1264, 1.442695
    %v1266 = vpow.pop %v1265
    %v1267 = vadd.f32 %v1266, 1.0
    %v1268 = vrcp.pop %v1267
    %v1269 = vmul.f32 1.0, %v1268
    %v1270 = vmul.f32 %v1262, %v1152
    %v1271 = vmul.f32 %v1256, %v1263
    %v1272 = vadd.f32 %v1270, %v1271
    %v1273 = vtanh.pop %v1272
    %v1274 = vmul.f32 %v1269, %v1273
    %v1275 = vmax.f32 %v1155, %v1274
    %v1276 = vpack.c.bf16 %v1274, %v1274
    %v1281 = vrot.slane %v377, 4
    %v1282 = vrot.slane %v378, 4
    %v1283 = vrot.slane %v379, 4
    %v1284 = vrot.slane %v380, 4
    %1289 = vmatprep.subr.bf16.mxu0 %v522
    %1290 = vmatpush1.bf16.msra.mxu0 %v521
    %1291 = vmatprep.subr.bf16.mxu0 %v526
    %1292 = vmatpush1.bf16.msra.mxu0 %v525
    %1293 = vmatprep.subr.bf16.mxu0 %v530
    %1294 = vmatpush1.bf16.msra.mxu0 %v529
    %1295 = vmatprep.subr.bf16.mxu0 %v534
    %1296 = vmatpush1.bf16.msra.mxu0 %v533
    %1297 = vmatprep.subr.bf16.mxu0 %v538
    %1298 = vmatpush1.bf16.msra.mxu0 %v537
    %1299 = vmatprep.subr.bf16.mxu0 %v542
    %1300 = vmatpush1.bf16.msra.mxu0 %v541
    %1301 = vmatprep.subr.bf16.mxu0 %v546
    %1302 = vmatpush1.bf16.msra.mxu0 %v545
    %1303 = vmatprep.subr.bf16.mxu0 %v550
    %1304 = vmatpush1.bf16.msra.mxu0 %v549
    %1305 = vmatprep.subr.bf16.mxu0 0
    %1306 = vmatpush1.bf16.msra.mxu0 0
    %1307 = vmatprep.subr.bf16.mxu0 0
    %1308 = vmatpush1.bf16.msra.mxu0 0
    %1309 = vmatprep.subr.bf16.mxu0 0
    %1310 = vmatpush1.bf16.msra.mxu0 0
    %1311 = vmatprep.subr.bf16.mxu0 0
    %1312 = vmatpush1.bf16.msra.mxu0 0
    %1313 = vmatprep.subr.bf16.mxu0 0
    %1314 = vmatpush1.bf16.msra.mxu0 0
    %1315 = vmatprep.subr.bf16.mxu0 0
    %1316 = vmatpush1.bf16.msra.mxu0 0
    %1317 = vmatprep.subr.bf16.mxu0 0
    %1318 = vmatpush1.bf16.msra.mxu0 0
    %1319 = vmatprep.subr.bf16.mxu0 0
    %1320 = vmatpush1.bf16.msra.mxu0 0
    %1321 = vmatprep.mubr.bf16.mxu0 0
    %1322 = vmatmul.mubr.bf16.gmra.mrb[0].mxu0 %v1276
    %v1323 = vpop.f32.mrb[0].mxu0
    %v1324 = vadd.f32 %v1281, %v1323
    %v1325 = vpop.f32.mrb[0].mxu0
    %v1326 = vadd.f32 %v1282, %v1325
    %v1327 = vpop.f32.mrb[0].mxu0
    %v1328 = vpop.f32.mrb[0].mxu0
    %1329 = vdwg.mxu0
    %1330 = vmatprep.subr.bf16.mxu0 %v524
    %1331 = vmatpush1.bf16.msra.mxu0 %v523
    %1332 = vmatprep.subr.bf16.mxu0 %v528
    %1333 = vmatpush1.bf16.msra.mxu0 %v527
    %1334 = vmatprep.subr.bf16.mxu0 %v532
    %1335 = vmatpush1.bf16.msra.mxu0 %v531
    %1336 = vmatprep.subr.bf16.mxu0 %v536
    %1337 = vmatpush1.bf16.msra.mxu0 %v535
    %1338 = vmatprep.subr.bf16.mxu0 %v540
    %1339 = vmatpush1.bf16.msra.mxu0 %v539
    %1340 = vmatprep.subr.bf16.mxu0 %v544
    %1341 = vmatpush1.bf16.msra.mxu0 %v543
    %1342 = vmatprep.subr.bf16.mxu0 %v548
    %1343 = vmatpush1.bf16.msra.mxu0 %v547
    %1344 = vmatprep.subr.bf16.mxu0 %v552
    %1345 = vmatpush1.bf16.msra.mxu0 %v551
    %1346 = vmatprep.subr.bf16.mxu0 0
    %1347 = vmatpush1.bf16.msra.mxu0 0
    %1348 = vmatprep.subr.bf16.mxu0 0
    %1349 = vmatpush1.bf16.msra.mxu0 0
    %1350 = vmatprep.subr.bf16.mxu0 0
    %1351 = vmatpush1.bf16.msra.mxu0 0
    %1352 = vmatprep.subr.bf16.mxu0 0
    %1353 = vmatpush1.bf16.msra.mxu0 0
    %1354 = vmatprep.subr.bf16.mxu0 0
    %1355 = vmatpush1.bf16.msra.mxu0 0
    %1356 = vmatprep.subr.bf16.mxu0 0
    %1357 = vmatpush1.bf16.msra.mxu0 0
    %1358 = vmatprep.subr.bf16.mxu0 0
    %1359 = vmatpush1.bf16.msra.mxu0 0
    %1360 = vmatprep.subr.bf16.mxu0 0
    %1361 = vmatpush1.bf16.msra.mxu0 0
    %1362 = vmatprep.mubr.bf16.mxu0 0
    %1363 = vmatmul.mubr.bf16.gmra.mrb[0].mxu0 %v1276
    %v1364 = vpop.f32.mrb[0].mxu0
    %v1365 = vadd.f32 %v1283, %v1364
    %v1366 = vpop.f32.mrb[0].mxu0
    %v1367 = vadd.f32 %v1284, %v1366
    %v1368 = vpop.f32.mrb[0].mxu0
    %v1369 = vpop.f32.mrb[0].mxu0
    %1370 = vdwg.mxu0
    %v1371 = vxor.u32 %v1324, 2147483648
    %v1372 = vmul.f32 %v1371, 1.442695
    %v1373 = vpow.pop %v1372
    %v1374 = vadd.f32 %v1373, 1.0
    %v1375 = vrcp.pop %v1374
    %v1376 = vmul.f32 1.0, %v1375
    %v1377 = vxor.u32 %v1326, 2147483648
    %v1378 = vmul.f32 %v1377, 1.442695
    %v1379 = vpow.pop %v1378
    %v1380 = vadd.f32 %v1379, 1.0
    %v1381 = vrcp.pop %v1380
    %v1382 = vmul.f32 1.0, %v1381
    %v1383 = vtanh.pop %v1365
    %v1384 = vxor.u32 %v1367, 2147483648
    %v1385 = vmul.f32 %v1384, 1.442695
    %v1386 = vpow.pop %v1385
    %v1387 = vadd.f32 %v1386, 1.0
    %v1388 = vrcp.pop %v1387
    %v1389 = vmul.f32 1.0, %v1388
    %v1390 = vmul.f32 %v1382, %v1272
    %v1391 = vmul.f32 %v1376, %v1383
    %v1392 = vadd.f32 %v1390, %v1391
    %v1393 = vtanh.pop %v1392
    %v1394 = vmul.f32 %v1389, %v1393
    %v1395 = vmax.f32 %v1275, %v1394
    %v1396 = vpack.c.bf16 %v1394, %v1394
    %v1397 = vrot.slane %v389, 6
    %v1398 = vrot.slane %v390, 6
    %v1399 = vrot.slane %v391, 6
    %v1400 = vrot.slane %v392, 6
    %1405 = vmatprep.subr.bf16.mxu0 %v522
    %1406 = vmatpush1.bf16.msra.mxu0 %v521
    %1407 = vmatprep.subr.bf16.mxu0 %v526
    %1408 = vmatpush1.bf16.msra.mxu0 %v525
    %1409 = vmatprep.subr.bf16.mxu0 %v530
    %1410 = vmatpush1.bf16.msra.mxu0 %v529
    %1411 = vmatprep.subr.bf16.mxu0 %v534
    %1412 = vmatpush1.bf16.msra.mxu0 %v533
    %1413 = vmatprep.subr.bf16.mxu0 %v538
    %1414 = vmatpush1.bf16.msra.mxu0 %v537
    %1415 = vmatprep.subr.bf16.mxu0 %v542
    %1416 = vmatpush1.bf16.msra.mxu0 %v541
    %1417 = vmatprep.subr.bf16.mxu0 %v546
    %1418 = vmatpush1.bf16.msra.mxu0 %v545
    %1419 = vmatprep.subr.bf16.mxu0 %v550
    %1420 = vmatpush1.bf16.msra.mxu0 %v549
    %1421 = vmatprep.subr.bf16.mxu0 0
    %1422 = vmatpush1.bf16.msra.mxu0 0
    %1423 = vmatprep.subr.bf16.mxu0 0
    %1424 = vmatpush1.bf16.msra.mxu0 0
    %1425 = vmatprep.subr.bf16.mxu0 0
    %1426 = vmatpush1.bf16.msra.mxu0 0
    %1427 = vmatprep.subr.bf16.mxu0 0
    %1428 = vmatpush1.bf16.msra.mxu0 0
    %1429 = vmatprep.subr.bf16.mxu0 0
    %1430 = vmatpush1.bf16.msra.mxu0 0
    %1431 = vmatprep.subr.bf16.mxu0 0
    %1432 = vmatpush1.bf16.msra.mxu0 0
    %1433 = vmatprep.subr.bf16.mxu0 0
    %1434 = vmatpush1.bf16.msra.mxu0 0
    %1435 = vmatprep.subr.bf16.mxu0 0
    %1436 = vmatpush1.bf16.msra.mxu0 0
    %1437 = vmatprep.mubr.bf16.mxu0 0
    %1438 = vmatmul.mubr.bf16.gmra.mrb[0].mxu0 %v1396
    %v1439 = vpop.f32.mrb[0].mxu0
    %v1440 = vadd.f32 %v1397, %v1439
    %v1441 = vpop.f32.mrb[0].mxu0
    %v1442 = vadd.f32 %v1398, %v1441
    %v1443 = vpop.f32.mrb[0].mxu0
    %v1444 = vpop.f32.mrb[0].mxu0
    %1445 = vdwg.mxu0
    %1446 = vmatprep.subr.bf16.mxu0 %v524
    %1447 = vmatpush1.bf16.msra.mxu0 %v523
    %1448 = vmatprep.subr.bf16.mxu0 %v528
    %1449 = vmatpush1.bf16.msra.mxu0 %v527
    %1450 = vmatprep.subr.bf16.mxu0 %v532
    %1451 = vmatpush1.bf16.msra.mxu0 %v531
    %1452 = vmatprep.subr.bf16.mxu0 %v536
    %1453 = vmatpush1.bf16.msra.mxu0 %v535
    %1454 = vmatprep.subr.bf16.mxu0 %v540
    %1455 = vmatpush1.bf16.msra.mxu0 %v539
    %1456 = vmatprep.subr.bf16.mxu0 %v544
    %1457 = vmatpush1.bf16.msra.mxu0 %v543
    %1458 = vmatprep.subr.bf16.mxu0 %v548
    %1459 = vmatpush1.bf16.msra.mxu0 %v547
    %1460 = vmatprep.subr.bf16.mxu0 %v552
    %1461 = vmatpush1.bf16.msra.mxu0 %v551
    %1462 = vmatprep.subr.bf16.mxu0 0
    %1463 = vmatpush1.bf16.msra.mxu0 0
    %1464 = vmatprep.subr.bf16.mxu0 0
    %1465 = vmatpush1.bf16.msra.mxu0 0
    %1466 = vmatprep.subr.bf16.mxu0 0
    %1467 = vmatpush1.bf16.msra.mxu0 0
    %1468 = vmatprep.subr.bf16.mxu0 0
    %1469 = vmatpush1.bf16.msra.mxu0 0
    %1470 = vmatprep.subr.bf16.mxu0 0
    %1471 = vmatpush1.bf16.msra.mxu0 0
    %1472 = vmatprep.subr.bf16.mxu0 0
    %1473 = vmatpush1.bf16.msra.mxu0 0
    %1474 = vmatprep.subr.bf16.mxu0 0
    %1475 = vmatpush1.bf16.msra.mxu0 0
    %1476 = vmatprep.subr.bf16.mxu0 0
    %1477 = vmatpush1.bf16.msra.mxu0 0
    %1478 = vmatprep.mubr.bf16.mxu0 0
    %1479 = vmatmul.mubr.bf16.gmra.mrb[0].mxu0 %v1396
    %v1480 = vpop.f32.mrb[0].mxu0
    %v1481 = vadd.f32 %v1399, %v1480
    %v1482 = vpop.f32.mrb[0].mxu0
    %v1483 = vadd.f32 %v1400, %v1482
    %v1484 = vpop.f32.mrb[0].mxu0
    %v1485 = vpop.f32.mrb[0].mxu0
    %1486 = vdwg.mxu0
    %v1487 = vxor.u32 %v1440, 2147483648
    %v1488 = vmul.f32 %v1487, 1.442695
    %v1489 = vpow.pop %v1488
    %v1490 = vadd.f32 %v1489, 1.0
    %v1491 = vrcp.pop %v1490
    %v1492 = vmul.f32 1.0, %v1491
    %v1493 = vxor.u32 %v1442, 2147483648
    %v1494 = vmul.f32 %v1493, 1.442695
    %v1495 = vpow.pop %v1494
    %v1496 = vadd.f32 %v1495, 1.0
    %v1497 = vrcp.pop %v1496
    %v1498 = vmul.f32 1.0, %v1497
    %v1499 = vtanh.pop %v1481
    %v1500 = vxor.u32 %v1483, 2147483648
    %v1501 = vmul.f32 %v1500, 1.442695
    %v1502 = vpow.pop %v1501
    %v1503 = vadd.f32 %v1502, 1.0
    %v1504 = vrcp.pop %v1503
    %v1505 = vmul.f32 1.0, %v1504
    %v1506 = vmul.f32 %v1498, %v1392
    %v1507 = vmul.f32 %v1492, %v1499
    %v1508 = vadd.f32 %v1506, %v1507
    %v1509 = vtanh.pop %v1508
    %v1510 = vmul.f32 %v1505, %v1509
    %v1511 = vmax.f32 %v1395, %v1510
    %v1512 = vpack.c.bf16 %v1511, %v1511
    %v1513 = vld [vmem:[%s5] sm:$0xf]
    %v1514 = vld [vmem:[%s5 + $0x4] sm:$0xf]
    %v1515 = vld [vmem:[%s5 + $0x8] sm:$0xf]
    %v1516 = vld [vmem:[%s5 + $0xc] sm:$0xf]
    %v1517 = vld [vmem:[%s5 + $0x10] sm:$0xf]
    %v1518 = vld [vmem:[%s5 + $0x14] sm:$0xf]
    %v1519 = vld [vmem:[%s5 + $0x18] sm:$0xf]
    %v1520 = vld [vmem:[%s5 + $0x1c] sm:$0xf]
    %v1521 = vld [vmem:[%s5 + $0x20] sm:$0xf]
    %v1522 = vld [vmem:[%s5 + $0x24] sm:$0xf]
    %v1523 = vld [vmem:[%s5 + $0x28] sm:$0xf]
    %v1524 = vld [vmem:[%s5 + $0x2c] sm:$0xf]
    %v1525 = vld [vmem:[%s5 + $0x30] sm:$0xf]
    %v1526 = vld [vmem:[%s5 + $0x34] sm:$0xf]
    %v1527 = vld [vmem:[%s5 + $0x38] sm:$0xf]
    %v1528 = vld [vmem:[%s5 + $0x3c] sm:$0xf]
    %v1529 = vpack.c.bf16 %v144, %v144
    %v1530 = vld [vmem:[%s6] sm:$0xf]
    %v1531 = vld [vmem:[%s6 + $0x4] sm:$0xf]
    %v1534 = vunpack.c.l.b16 %v1530
    %v1535 = vunpack.c.l.b16 %v1531
    %v1536 = vpack.c.b16 %v1535, %v1534
    %v1539 = vsel %vm192, %v1529, 0
    %1541 = vmatprep.subr.bf16.mxu0 0
    %1542 = vmatpush1.bf16.msra.mxu0 %v1536
    %1543 = vmatprep.subr.bf16.mxu0 0
    %1544 = vmatpush1.bf16.msra.mxu0 0
    %1545 = vmatprep.subr.bf16.mxu0 0
    %1546 = vmatpush1.bf16.msra.mxu0 0
    %1547 = vmatprep.subr.bf16.mxu0 0
    %1548 = vmatpush1.bf16.msra.mxu0 0
    %1549 = vmatprep.subr.bf16.mxu0 0
    %1550 = vmatpush1.bf16.msra.mxu0 0
    %1551 = vmatprep.subr.bf16.mxu0 0
    %1552 = vmatpush1.bf16.msra.mxu0 0
    %1553 = vmatprep.subr.bf16.mxu0 0
    %1554 = vmatpush1.bf16.msra.mxu0 0
    %1555 = vmatprep.subr.bf16.mxu0 0
    %1556 = vmatpush1.bf16.msra.mxu0 0
    %1557 = vmatprep.subr.bf16.mxu0 0
    %1558 = vmatpush1.bf16.msra.mxu0 0
    %1559 = vmatprep.subr.bf16.mxu0 0
    %1560 = vmatpush1.bf16.msra.mxu0 0
    %1561 = vmatprep.subr.bf16.mxu0 0
    %1562 = vmatpush1.bf16.msra.mxu0 0
    %1563 = vmatprep.subr.bf16.mxu0 0
    %1564 = vmatpush1.bf16.msra.mxu0 0
    %1565 = vmatprep.subr.bf16.mxu0 0
    %1566 = vmatpush1.bf16.msra.mxu0 0
    %1567 = vmatprep.subr.bf16.mxu0 0
    %1568 = vmatpush1.bf16.msra.mxu0 0
    %1569 = vmatprep.subr.bf16.mxu0 0
    %1570 = vmatpush1.bf16.msra.mxu0 0
    %1571 = vmatprep.subr.bf16.mxu0 0
    %1572 = vmatpush1.bf16.msra.mxu0 0
    %1573 = vmatprep.mubr.bf16.mxu0 0
    %1574 = vmatmul.mubr.bf16.gmra.mrb[0].mxu0 %v1539
    %v1575 = vpop.f32.mrb[0].mxu0
    %v1576 = vadd.f32 0.0, %v1575
    %v1577 = vpop.f32.mrb[0].mxu0
    %v1578 = vpop.f32.mrb[0].mxu0
    %v1579 = vpop.f32.mrb[0].mxu0
    %1580 = vdwg.mxu0
    %v1597 = vunpack.c.l.b16 %v1513
    %v1598 = vunpack.c.l.b16 %v1514
    %v1599 = vunpack.c.l.b16 %v1515
    %v1600 = vunpack.c.l.b16 %v1516
    %v1601 = vunpack.c.l.b16 %v1517
    %v1602 = vunpack.c.l.b16 %v1518
    %v1603 = vunpack.c.l.b16 %v1519
    %v1604 = vunpack.c.l.b16 %v1520
    %v1605 = vunpack.c.l.b16 %v1521
    %v1606 = vunpack.c.l.b16 %v1522
    %v1607 = vunpack.c.l.b16 %v1523
    %v1608 = vunpack.c.l.b16 %v1524
    %v1609 = vunpack.c.l.b16 %v1525
    %v1610 = vunpack.c.l.b16 %v1526
    %v1611 = vunpack.c.l.b16 %v1527
    %v1612 = vunpack.c.l.b16 %v1528
    %v1613 = vpack.c.b16 %v1598, %v1597
    %v1614 = vpack.c.b16 %v1600, %v1599
    %v1615 = vpack.c.b16 %v1602, %v1601
    %v1616 = vpack.c.b16 %v1604, %v1603
    %v1617 = vpack.c.b16 %v1606, %v1605
    %v1618 = vpack.c.b16 %v1608, %v1607
    %v1619 = vpack.c.b16 %v1610, %v1609
    %v1620 = vpack.c.b16 %v1612, %v1611
    %1629 = vmatprep.subr.bf16.mxu0 0
    %1630 = vmatpush1.bf16.msra.mxu0 %v1613
    %1631 = vmatprep.subr.bf16.mxu0 0
    %1632 = vmatpush1.bf16.msra.mxu0 %v1614
    %1633 = vmatprep.subr.bf16.mxu0 0
    %1634 = vmatpush1.bf16.msra.mxu0 %v1615
    %1635 = vmatprep.subr.bf16.mxu0 0
    %1636 = vmatpush1.bf16.msra.mxu0 %v1616
    %1637 = vmatprep.subr.bf16.mxu0 0
    %1638 = vmatpush1.bf16.msra.mxu0 %v1617
    %1639 = vmatprep.subr.bf16.mxu0 0
    %1640 = vmatpush1.bf16.msra.mxu0 %v1618
    %1641 = vmatprep.subr.bf16.mxu0 0
    %1642 = vmatpush1.bf16.msra.mxu0 %v1619
    %1643 = vmatprep.subr.bf16.mxu0 0
    %1644 = vmatpush1.bf16.msra.mxu0 %v1620
    %1645 = vmatprep.subr.bf16.mxu0 0
    %1646 = vmatpush1.bf16.msra.mxu0 0
    %1647 = vmatprep.subr.bf16.mxu0 0
    %1648 = vmatpush1.bf16.msra.mxu0 0
    %1649 = vmatprep.subr.bf16.mxu0 0
    %1650 = vmatpush1.bf16.msra.mxu0 0
    %1651 = vmatprep.subr.bf16.mxu0 0
    %1652 = vmatpush1.bf16.msra.mxu0 0
    %1653 = vmatprep.subr.bf16.mxu0 0
    %1654 = vmatpush1.bf16.msra.mxu0 0
    %1655 = vmatprep.subr.bf16.mxu0 0
    %1656 = vmatpush1.bf16.msra.mxu0 0
    %1657 = vmatprep.subr.bf16.mxu0 0
    %1658 = vmatpush1.bf16.msra.mxu0 0
    %1659 = vmatprep.subr.bf16.mxu0 0
    %1660 = vmatpush1.bf16.msra.mxu0 0
    %1661 = vmatprep.mubr.bf16.mxu0 0
    %1662 = vmatmul.mubr.bf16.gmra.mrb[0].mxu0 %v1512
    %v1663 = vpop.f32.mrb[0].mxu0
    %v1664 = vadd.f32 %v1576, %v1663
    %v1665 = vpop.f32.mrb[0].mxu0
    %v1666 = vpop.f32.mrb[0].mxu0
    %v1667 = vpop.f32.mrb[0].mxu0
    %1668 = vdwg.mxu0
    %v1669 = vld [vmem:[%s7] sm:$0x1]
    %v1671 = vlaneseq
    %v1672 = vshrl.u32 %v1671, 7
    %v1673 = vsub.s32 0, %v1672
    %v1674 = vrot.slane %v1669, %v1673
    %v1676 = vadd.f32 %v1664, %v1674
    %vm1677 = vcmask 25600
    %v1678 = vsel %vm1677, %v1676, -inf
    %1679 = vmax.xlane.f32.xlu0 %v1678
    %v1680 = vpop.xlane.xlu0 %1679
    %v1681 = vsub.f32 %v1676, %v1680
    %v1682 = vmul.f32 %v1681, 1.442695
    %v1683 = vpow.pop %v1682
    %v1684 = vsel %vm1677, %v1683, 0.0
    %1685 = vadd.xlane.f32.xlu0 %v1684
    %v1686 = vpop.xlane.xlu0 %1685
    %v1687 = vrcp.pop %v1686
    %v1688 = vmul.f32 %v1683, %v1687
    %1689 = vst.msk [vmem:[#allocation5] sm:$0x3] %vm1677, %v1688
    // Predicated region
    $region38: #{text_rcnn_forward.1} parent=1 // pred_check
      _
    $region39: #{text_rcnn_forward.1} parent=1 // pred_check_branch
      %1691 = sbr.rel (0) target = $region41
    $region40: #{text_rcnn_forward.1} parent=1 // pred_region
      %s1693 = ssub.s32 32, 32
      %1694 = vsyncadd [#allocation4], %s1693
      %s1696 = sshll.u32 [#allocation5], 4
      %s1697 = int_to_ptr.vmem [resolvable:$true] %s1696
      %1699 = dma.vmem_to_hbm [thread:$0]  %s1697, 32, %s8, [#allocation4]
    $region41: #{text_rcnn_forward.1} parent=1 // pred_fallthru
      _
    // Predicated region
    $region42: #{text_rcnn_forward.1} parent=1 // pred_check
      _
    $region43: #{text_rcnn_forward.1} parent=1 // pred_check_branch
      %1701 = sbr.rel (0) target = $region45
    $region44: #{text_rcnn_forward.1} parent=1 // pred_region
      %1702 = dma.done [#allocation4], 32
    $region45: #{text_rcnn_forward.1} parent=1 // pred_fallthru
      _
    %1703 = vsyncpa [#allocation3], 1
    %1704 = vsyncpa [#allocation4], 1

</llo_original>
